<compile_context>
chip_gen: v6e
topology: v6e:2x2x1
jax: 0.10.0
libtpu: 0.0.40
codegen_flags: <defaults>
</compile_context>

<pallas_src>
import jax
import jax.numpy as jnp
from jax import lax
from jax.experimental import pallas as pl
from jax.experimental.pallas import tpu as pltpu

NUM_GROUPS = 8       # nn.GroupNorm(8, mip)
GN_EPS = 1e-5
LEAKY_SLOPE = 0.2    # nn.LeakyReLU(0.2)


def _hamburger_kernel(x_ref, w1_ref, b1_ref, gsym_ref, gnw_ref, gnb_ref,
                      wh_ref, bh_ref, ww_ref, bw_ref, wd_ref, bd_ref, rep_ref,
                      o_ref, pw_ref, pd_ref, ah_ref, ad_ref):
    """Fused Hamburger forward for one batch element.

    x_ref / o_ref: (1, S, S, S, C) channels-last blocks, spatial order (h, w, d).
    Scratch (all f32, VMEM): pw / pd pooled planes, ah / ad gate maps, each (S, S, C).
    """
    _, S, _, _, C = x_ref.shape
    mip = w1_ref.shape[1]
    ss = S * S
    f32 = jnp.float32
    inv_s = f32(1.0 / S)

    # ---- pass 1: ONE fused sweep over h computes all three pooled planes ----
    def pool_body(i, acc_h):
        sl = x_ref[0, pl.ds(i, 1), :, :, :][0].astype(f32)            # (w, d, C)
        pw_ref[pl.ds(i, 1), :, :] = jnp.sum(sl, axis=0, keepdims=True) * inv_s
        pd_ref[pl.ds(i, 1), :, :] = (jnp.sum(sl, axis=1) * inv_s)[None]
        return acc_h + sl

    acc_h = lax.fori_loop(0, S, pool_body, jnp.zeros((S, S, C), f32))
    p_h = (acc_h * inv_s).reshape(ss, C)        # rows = w*S + d  (pooled over h)
    p_w = pw_ref[...].reshape(ss, C)            # rows = h*S + d  (pooled over w)
    p_d = pd_ref[...].reshape(ss, C)            # rows = h*S + w  (pooled over d)

    # ---- conv1 (1x1x1, C -> mip) on each pooled plane (shared weights) ------
    w1 = w1_ref[...]
    b1 = b1_ref[...]

    def mix(p):
        return jnp.dot(p, w1, preferred_element_type=f32) + b1

    z_h, z_w, z_d = mix(p_h), mix(p_w), mix(p_d)

    # ---- GroupNorm(8, mip): reduce rows FIRST, then the tiny group mix ------
    # sum_rows(z) @ gsym == sum_rows(z @ gsym), so the group statistics only
    # need two (1, mip) x (mip, mip) matmuls.
    cpg = mip // NUM_GROUPS
    inv_cnt = f32(1.0 / (3 * ss * cpg))
    row_sum = (jnp.sum(z_h, axis=0, keepdims=True)
               + jnp.sum(z_w, axis=0, keepdims=True)
               + jnp.sum(z_d, axis=0, keepdims=True))                 # (1, mip)
    row_sq = (jnp.sum(z_h * z_h, axis=0, keepdims=True)
              + jnp.sum(z_w * z_w, axis=0, keepdims=True)
              + jnp.sum(z_d * z_d, axis=0, keepdims=True))            # (1, mip)
    gmean = jnp.dot(row_sum, gsym_ref[...], preferred_element_type=f32) * inv_cnt
    gsq = jnp.dot(row_sq, gsym_ref[...], preferred_element_type=f32) * inv_cnt
    var = jnp.maximum(gsq - gmean * gmean, 0.0)
    scale = lax.rsqrt(var + GN_EPS) * gnw_ref[...]                    # (1, mip)
    shift = gnb_ref[...] - gmean * scale                              # (1, mip)

    # ---- GN affine + LeakyReLU(0.2) + gate convs (mip -> C) + sigmoid -------
    def gate(z, w_ref, b_ref):
        zn = z * scale + shift
        zn = jnp.where(zn >= 0, zn, LEAKY_SLOPE * zn)
        t = jnp.dot(zn, w_ref[...], preferred_element_type=f32) + b_ref[...]
        return 1.0 / (1.0 + jnp.exp(-t))        # exp runs on the EUP; tiny maps

    ah_ref[...] = gate(z_h, wh_ref, bh_ref).reshape(S, S, C)   # [out-h, d, C]
    a_w = gate(z_w, ww_ref, bw_ref).reshape(S, S, C)           # [out-w, d, C]
    ad_ref[...] = gate(z_d, wd_ref, bd_ref).reshape(S, S, C)   # [out-h, out-w, C]

    rep = rep_ref[...]                 # (ss, S) 0/1, rep[j*S + k, j'] = (j == j')

    # ---- pass 2: slab-wise gate combine + residual --------------------------
    # out[i, j, k] = x[i, j, k] + a_w[j, k] * a_h[i, k] * a_d[i, j]
    # (including the PyTorch forward's swapped h/w indexing of the a_h map).
    # Only one (S, S, C) slab of x / gate / out is live at a time; a_d's
    # replication along d is a tiny 0/1 matmul on the idle MXU.
    def combine_body(i, carry):
        x_i = x_ref[0, pl.ds(i, 1), :, :, :][0].astype(f32)    # (w, d, C)
        ah_i = ah_ref[pl.ds(i, 1), :, :][0]                    # (d, C)
        ad_i = ad_ref[pl.ds(i, 1), :, :][0]                    # (w, C)
        ad_b = jnp.dot(rep, ad_i, preferred_element_type=f32).reshape(S, S, C)
        out_i = x_i + a_w * ah_i[None, :, :] * ad_b
        o_ref[0, pl.ds(i, 1), :, :, :] = out_i[None].astype(o_ref.dtype)
        return carry

    lax.fori_loop(0, S, combine_body, 0)


def _ceil_to(x, m):
    return -(-x // m) * m


def hamburger_forward_ndhwc(x_cl, params):
    """Hamburger forward on a channels-last (N, H, W, D, C) cubic volume."""
    N, S1, S2, S3, C = x_cl.shape
    assert S1 == S2 == S3, "Hamburger needs a cubic volume (required by its torch.cat)"
    S = S1
    mip, c_in = params["w1"].shape
    assert c_in == C and params["wh"].shape == (C, mip)
    assert mip % NUM_GROUPS == 0
    ss = S * S
    f32 = jnp.float32

    w1 = params["w1"].astype(f32).T                           # (C, mip)
    b1 = params["b1"].astype(f32).reshape(1, mip)
    gn_w = params["gn_w"].astype(f32).reshape(1, mip)
    gn_b = params["gn_b"].astype(f32).reshape(1, mip)
    gid = jnp.arange(mip) // (mip // NUM_GROUPS)
    gsym = (gid[:, None] == gid[None, :]).astype(f32)         # (mip, mip) group membership
    wh = params["wh"].astype(f32).T                           # (mip, C)
    ww = params["ww"].astype(f32).T
    wd = params["wd"].astype(f32).T
    bh = params["bh"].astype(f32).reshape(1, C)
    bw = params["bw"].astype(f32).reshape(1, C)
    bd = params["bd"].astype(f32).reshape(1, C)
    # (ss, S) 0/1 replication matrix for the per-slab a_d broadcast along d.
    rep = jnp.repeat(jnp.eye(S, dtype=f32), S, axis=0)

    def const_spec(shape):
        return pl.BlockSpec(shape, lambda n: (0,) * len(shape))

    # --- VMEM budget: lane-padded footprint of the per-step blocks + scratch.
    # On v7x (64 MiB/TC) prefer shrinking the per-step block (e.g. adding an
    # h-slab grid axis) instead of raising this limit past ~56 MiB.
    itemsize = jnp.dtype(x_cl.dtype).itemsize
    block_vmem = S * S * _ceil_to(S, 8) * _ceil_to(C, 128) * itemsize
    plane_vmem = S * _ceil_to(S, 8) * _ceil_to(C, 128) * 4
    vmem_est = 4 * block_vmem + 4 * plane_vmem + (4 << 20)    # in+out double-buffered
    vmem_limit = int(min(max(vmem_est, 32 << 20), 100 << 20))

    flops = N * (8 * S ** 3 * C           # pooling sweep + gate combine + residual
                 + 6 * ss * C * mip       # conv1 on the three pooled planes
                 + 8 * 3 * ss * mip       # GN stats + affine + LeakyReLU
                 + 6 * ss * mip * C       # gate convs
                 + 2 * S ** 4 * C)        # per-slab a_d replication matmuls
    cost = pl.CostEstimate(
        flops=int(flops),
        transcendentals=int(N * 3 * ss * C),
        bytes_accessed=int(itemsize * 2 * N * S ** 3 * C
                           + 4 * (2 * C * mip + mip * mip + 3 * mip + 3 * C
                                  + 3 * mip * C + ss * S)),
    )

    return pl.pallas_call(
        _hamburger_kernel,
        out_shape=jax.ShapeDtypeStruct((N, S, S, S, C), x_cl.dtype),
        grid_spec=pltpu.PrefetchScalarGridSpec(
            num_scalar_prefetch=0,
            grid=(N,),                                         # one batch element per step
            in_specs=[
                pl.BlockSpec((1, S, S, S, C), lambda n: (n, 0, 0, 0, 0)),
                const_spec((C, mip)),      # conv1 weight
                const_spec((1, mip)),      # conv1 bias
                const_spec((mip, mip)),    # group-membership matrix
                const_spec((1, mip)),      # gn1 weight
                const_spec((1, mip)),      # gn1 bias
                const_spec((mip, C)),      # conv_h weight
                const_spec((1, C)),        # conv_h bias
                const_spec((mip, C)),      # conv_w weight
                const_spec((1, C)),        # conv_w bias
                const_spec((mip, C)),      # conv_d weight
                const_spec((1, C)),        # conv_d bias
                const_spec((ss, S)),       # a_d slab replication matrix
            ],
            out_specs=pl.BlockSpec((1, S, S, S, C), lambda n: (n, 0, 0, 0, 0)),
            scratch_shapes=[
                pltpu.VMEM((S, S, C), jnp.float32),   # pooled-over-w plane
                pltpu.VMEM((S, S, C), jnp.float32),   # pooled-over-d plane
                pltpu.VMEM((S, S, C), jnp.float32),   # a_h gate map
                pltpu.VMEM((S, S, C), jnp.float32),   # a_d gate map
            ],
        ),
        compiler_params=pltpu.CompilerParams(
            dimension_semantics=("parallel",),
            vmem_limit_bytes=vmem_limit,
        ),
        cost_estimate=cost,
    )(x_cl, w1, b1, gsym, gn_w, gn_b, wh, bh, ww, bw, wd, bd, rep)


def hamburger_forward(x_ncdhw, params):
    """Hamburger forward. x_ncdhw: (N, C, H, W, D) in the PyTorch layout.

    The two transposes below are plain XLA ops that honor the PyTorch NCDHW
    interface; callers that already hold channels-last data should call
    hamburger_forward_ndhwc directly and skip the extra HBM round trips.
    """
    N, C, H, W, D = x_ncdhw.shape
    assert H == W == D, "Hamburger needs a cubic volume (required by its torch.cat)"
    x_cl = jnp.transpose(x_ncdhw, (0, 2, 3, 4, 1))            # (N, S, S, S, C)
    out_cl = hamburger_forward_ndhwc(x_cl, params)
    return jnp.transpose(out_cl, (0, 4, 1, 2, 3))             # back to (N, C, H, W, D)


def hamburger_reference(x, params):
    """Pure-JAX (non-Pallas) transcription of the PyTorch forward, for checking."""
    hi = jax.lax.Precision.HIGHEST
    mip = params["w1"].shape[0]
    x_h = jnp.mean(x, axis=2, keepdims=True)
    x_w = jnp.transpose(jnp.mean(x, axis=3, keepdims=True), (0, 1, 3, 2, 4))
    x_d = jnp.transpose(jnp.mean(x, axis=4, keepdims=True), (0, 1, 4, 2, 3))
    y = jnp.concatenate([x_h, x_w, x_d], axis=2)              # (n, c, 3, S, S)

    def conv1x1(t, w, b):
        return (jnp.einsum("nc...,oc->no...", t, w, precision=hi)
                + b.reshape(1, -1, 1, 1, 1))

    y = conv1x1(y, params["w1"], params["b1"])                # (n, mip, 3, S, S)
    shape = y.shape
    yg = y.reshape(shape[0], NUM_GROUPS, mip // NUM_GROUPS, *shape[2:])
    mu = yg.mean(axis=(2, 3, 4, 5), keepdims=True)
    var = yg.var(axis=(2, 3, 4, 5), keepdims=True)
    y = ((yg - mu) / jnp.sqrt(var + GN_EPS)).reshape(shape)
    y = (y * params["gn_w"].reshape(1, -1, 1, 1, 1)
         + params["gn_b"].reshape(1, -1, 1, 1, 1))
    y = jnp.where(y >= 0, y, LEAKY_SLOPE * y)

    x_h2 = jnp.transpose(y[:, :, 0:1], (0, 1, 3, 2, 4))       # (n, mip, S, 1, S)
    x_w2 = y[:, :, 1:2]                                       # (n, mip, 1, S, S)
    x_d2 = jnp.transpose(y[:, :, 2:3], (0, 1, 3, 4, 2))       # (n, mip, S, S, 1)
    a_h = jax.nn.sigmoid(conv1x1(x_h2, params["wh"], params["bh"]))
    a_w = jax.nn.sigmoid(conv1x1(x_w2, params["ww"], params["bw"]))
    a_d = jax.nn.sigmoid(conv1x1(x_d2, params["wd"], params["bd"]))
    return (a_w * a_h) * a_d + x


if __name__ == "__main__":
    key = jax.random.PRNGKey(0)
    ks = jax.random.split(key, 11)

    N, C, S = 2, 32, 8                     # cubic spatial volume (h == w == d required)
    mip = max(8, C // 32)                  # as in the PyTorch module (reduction=32)

    x = jax.random.normal(ks[0], (N, C, S, S, S), dtype=jnp.float32)
    params = {
        "w1":   jax.random.normal(ks[1], (mip, C), jnp.float32) / (C ** 0.5),
        "b1":   0.1 * jax.random.normal(ks[2], (mip,), jnp.float32),
        "gn_w": 1.0 + 0.1 * jax.random.normal(ks[3], (mip,), jnp.float32),
        "gn_b": 0.1 * jax.random.normal(ks[4], (mip,), jnp.float32),
        "wh":   jax.random.normal(ks[5], (C, mip), jnp.float32) / (mip ** 0.5),
        "bh":   0.1 * jax.random.normal(ks[6], (C,), jnp.float32),
        "ww":   jax.random.normal(ks[7], (C, mip), jnp.float32) / (mip ** 0.5),
        "bw":   0.1 * jax.random.normal(ks[8], (C,), jnp.float32),
        "wd":   jax.random.normal(ks[9], (C, mip), jnp.float32) / (mip ** 0.5),
        "bd":   0.1 * jax.random.normal(ks[10], (C,), jnp.float32),
    }

    out = jax.block_until_ready(jax.jit(hamburger_forward)(x, params))
    ref = jax.block_until_ready(hamburger_reference(x, params))

    assert out.shape == ref.shape == (N, C, S, S, S)
    max_err = float(jnp.max(jnp.abs(out - ref)))
    assert max_err < 1e-3, f"mismatch vs reference: {max_err}"
    print("KERNEL_OK")
</pallas_src>

<mosaic_0001>
module attributes {stable_mosaic.version = 11 : i64} {
  func.func @_hamburger_kernel(%arg0: i32, %arg1: memref<1x8x8x8x32xf32, #tpu.memory_space<vmem>>, %arg2: memref<32x8xf32, #tpu.memory_space<vmem>>, %arg3: memref<1x8xf32, #tpu.memory_space<vmem>>, %arg4: memref<8x8xf32, #tpu.memory_space<vmem>>, %arg5: memref<1x8xf32, #tpu.memory_space<vmem>>, %arg6: memref<1x8xf32, #tpu.memory_space<vmem>>, %arg7: memref<8x32xf32, #tpu.memory_space<vmem>>, %arg8: memref<1x32xf32, #tpu.memory_space<vmem>>, %arg9: memref<8x32xf32, #tpu.memory_space<vmem>>, %arg10: memref<1x32xf32, #tpu.memory_space<vmem>>, %arg11: memref<8x32xf32, #tpu.memory_space<vmem>>, %arg12: memref<1x32xf32, #tpu.memory_space<vmem>>, %arg13: memref<64x8xf32, #tpu.memory_space<vmem>>, %arg14: memref<1x8x8x8x32xf32, #tpu.memory_space<vmem>>, %arg15: memref<8x8x32xf32, #tpu.memory_space<vmem>>, %arg16: memref<8x8x32xf32, #tpu.memory_space<vmem>>, %arg17: memref<8x8x32xf32, #tpu.memory_space<vmem>>, %arg18: memref<8x8x32xf32, #tpu.memory_space<vmem>>) attributes {dimension_semantics = [#tpu.dimension_semantics<parallel>], iteration_bounds = array<i64: 2>, scalar_prefetch = 0 : i64, scratch_operands = 4 : i64, tpu.core_type = #tpu.core_type<tc>, window_params = [{transform_indices = @transform_0, window_bounds = array<i64: 1, 8, 8, 8, 32>}, {pipeline_mode = #tpu.pipeline_mode<synchronous>, transform_indices = @transform_1, window_bounds = array<i64: 32, 8>}, {pipeline_mode = #tpu.pipeline_mode<synchronous>, transform_indices = @transform_2, window_bounds = array<i64: 1, 8>}, {pipeline_mode = #tpu.pipeline_mode<synchronous>, transform_indices = @transform_3, window_bounds = array<i64: 8, 8>}, {pipeline_mode = #tpu.pipeline_mode<synchronous>, transform_indices = @transform_4, window_bounds = array<i64: 1, 8>}, {pipeline_mode = #tpu.pipeline_mode<synchronous>, transform_indices = @transform_5, window_bounds = array<i64: 1, 8>}, {pipeline_mode = #tpu.pipeline_mode<synchronous>, transform_indices = @transform_6, window_bounds = array<i64: 8, 32>}, {pipeline_mode = #tpu.pipeline_mode<synchronous>, transform_indices = @transform_7, window_bounds = array<i64: 1, 32>}, {pipeline_mode = #tpu.pipeline_mode<synchronous>, transform_indices = @transform_8, window_bounds = array<i64: 8, 32>}, {pipeline_mode = #tpu.pipeline_mode<synchronous>, transform_indices = @transform_9, window_bounds = array<i64: 1, 32>}, {pipeline_mode = #tpu.pipeline_mode<synchronous>, transform_indices = @transform_10, window_bounds = array<i64: 8, 32>}, {pipeline_mode = #tpu.pipeline_mode<synchronous>, transform_indices = @transform_11, window_bounds = array<i64: 1, 32>}, {pipeline_mode = #tpu.pipeline_mode<synchronous>, transform_indices = @transform_12, window_bounds = array<i64: 64, 8>}, {transform_indices = @transform_13, window_bounds = array<i64: 1, 8, 8, 8, 32>}]} {
    %cst = arith.constant 0.000000e+00 : f32
    %0 = vector.broadcast %cst : f32 to vector<8x8x32xf32>
    %cst_0 = arith.constant 1.250000e-01 : f32
    %c0_i32 = arith.constant 0 : i32
    %c8_i32 = arith.constant 8 : i32
    %1 = arith.addi %c0_i32, %c8_i32 : i32
    %c1_i32 = arith.constant 1 : i32
    %2 = scf.for %arg19 = %c0_i32 to %1 step %c1_i32 iter_args(%arg20 = %0) -> (vector<8x8x32xf32>)  : i32 {
      %c0_77 = arith.constant 0 : index
      %130 = arith.index_cast %arg19 : i32 to index
      %c0_78 = arith.constant 0 : index
      %c0_79 = arith.constant 0 : index
      %c0_80 = arith.constant 0 : index
      %131 = vector.load %arg1[%c0_77, %130, %c0_78, %c0_79, %c0_80] : memref<1x8x8x8x32xf32, #tpu.memory_space<vmem>>, vector<1x1x8x8x32xf32>
      %132 = vector.shape_cast %131 : vector<1x1x8x8x32xf32> to vector<1x8x8x32xf32>
      %133 = vector.shape_cast %132 : vector<1x8x8x32xf32> to vector<8x8x32xf32>
      %cst_81 = arith.constant dense<0.000000e+00> : vector<8x32xf32>
      %134 = vector.multi_reduction <add>, %133, %cst_81 [0] : vector<8x8x32xf32> to vector<8x32xf32>
      %135 = vector.shape_cast %134 : vector<8x32xf32> to vector<1x8x32xf32>
      %136 = vector.broadcast %cst_0 : f32 to vector<1x8x32xf32>
      %137 = arith.mulf %135, %136 : vector<1x8x32xf32>
      %138 = arith.index_cast %arg19 : i32 to index
      %c0_82 = arith.constant 0 : index
      %c0_83 = arith.constant 0 : index
      %139 = vector.load %arg15[%138, %c0_82, %c0_83] : memref<8x8x32xf32, #tpu.memory_space<vmem>>, vector<1x8x32xf32>
      tpu.vector_store %arg15[%138, %c0_82, %c0_83], %137 {strides = array<i32>} : memref<8x8x32xf32, #tpu.memory_space<vmem>>, vector<1x8x32xf32>,
      %cst_84 = arith.constant dense<0.000000e+00> : vector<8x32xf32>
      %140 = vector.multi_reduction <add>, %133, %cst_84 [1] : vector<8x8x32xf32> to vector<8x32xf32>
      %141 = vector.broadcast %cst_0 : f32 to vector<8x32xf32>
      %142 = arith.mulf %140, %141 : vector<8x32xf32>
      %143 = vector.shape_cast %142 : vector<8x32xf32> to vector<1x8x32xf32>
      %144 = arith.index_cast %arg19 : i32 to index
      %c0_85 = arith.constant 0 : index
      %c0_86 = arith.constant 0 : index
      %145 = vector.load %arg16[%144, %c0_85, %c0_86] : memref<8x8x32xf32, #tpu.memory_space<vmem>>, vector<1x8x32xf32>
      tpu.vector_store %arg16[%144, %c0_85, %c0_86], %143 {strides = array<i32>} : memref<8x8x32xf32, #tpu.memory_space<vmem>>, vector<1x8x32xf32>,
      %146 = arith.addf %arg20, %133 : vector<8x8x32xf32>
      scf.yield %146 : vector<8x8x32xf32>
    }
    %c8_i32_1 = arith.constant 8 : i32
    %cst_2 = arith.constant 1.250000e-01 : f32
    %3 = vector.broadcast %cst_2 : f32 to vector<8x8x32xf32>
    %4 = arith.mulf %2, %3 : vector<8x8x32xf32>
    %5 = vector.shape_cast %4 : vector<8x8x32xf32> to vector<64x32xf32>
    %c0 = arith.constant 0 : index
    %c0_3 = arith.constant 0 : index
    %c0_4 = arith.constant 0 : index
    %6 = vector.load %arg15[%c0, %c0_3, %c0_4] : memref<8x8x32xf32, #tpu.memory_space<vmem>>, vector<8x8x32xf32>
    %7 = vector.shape_cast %6 : vector<8x8x32xf32> to vector<64x32xf32>
    %c0_5 = arith.constant 0 : index
    %c0_6 = arith.constant 0 : index
    %c0_7 = arith.constant 0 : index
    %8 = vector.load %arg16[%c0_5, %c0_6, %c0_7] : memref<8x8x32xf32, #tpu.memory_space<vmem>>, vector<8x8x32xf32>
    %9 = vector.shape_cast %8 : vector<8x8x32xf32> to vector<64x32xf32>
    %c0_8 = arith.constant 0 : index
    %c0_9 = arith.constant 0 : index
    %10 = vector.load %arg2[%c0_8, %c0_9] : memref<32x8xf32, #tpu.memory_space<vmem>>, vector<32x8xf32>
    %c0_10 = arith.constant 0 : index
    %c0_11 = arith.constant 0 : index
    %11 = vector.load %arg3[%c0_10, %c0_11] : memref<1x8xf32, #tpu.memory_space<vmem>>, vector<1x8xf32>
    %cst_12 = arith.constant dense<0.000000e+00> : vector<64x8xf32>
    %12 = tpu.matmul %5, %10, %cst_12 {dimension_numbers = #tpu.dot_dimension_numbers<[1], [0], [0], [1], [0, 0, 1, 1], [], []>} : vector<64x32xf32>, vector<32x8xf32>, vector<64x8xf32> -> vector<64x8xf32>
    %13 = vector.broadcast %11 : vector<1x8xf32> to vector<64x8xf32>
    %14 = arith.addf %12, %13 : vector<64x8xf32>
    %cst_13 = arith.constant dense<0.000000e+00> : vector<64x8xf32>
    %15 = tpu.matmul %7, %10, %cst_13 {dimension_numbers = #tpu.dot_dimension_numbers<[1], [0], [0], [1], [0, 0, 1, 1], [], []>} : vector<64x32xf32>, vector<32x8xf32>, vector<64x8xf32> -> vector<64x8xf32>
    %16 = vector.broadcast %11 : vector<1x8xf32> to vector<64x8xf32>
    %17 = arith.addf %15, %16 : vector<64x8xf32>
    %cst_14 = arith.constant dense<0.000000e+00> : vector<64x8xf32>
    %18 = tpu.matmul %9, %10, %cst_14 {dimension_numbers = #tpu.dot_dimension_numbers<[1], [0], [0], [1], [0, 0, 1, 1], [], []>} : vector<64x32xf32>, vector<32x8xf32>, vector<64x8xf32> -> vector<64x8xf32>
    %19 = vector.broadcast %11 : vector<1x8xf32> to vector<64x8xf32>
    %20 = arith.addf %18, %19 : vector<64x8xf32>
    %cst_15 = arith.constant dense<0.000000e+00> : vector<8xf32>
    %21 = vector.multi_reduction <add>, %14, %cst_15 [0] : vector<64x8xf32> to vector<8xf32>
    %22 = vector.shape_cast %21 : vector<8xf32> to vector<1x8xf32>
    %cst_16 = arith.constant dense<0.000000e+00> : vector<8xf32>
    %23 = vector.multi_reduction <add>, %17, %cst_16 [0] : vector<64x8xf32> to vector<8xf32>
    %24 = vector.shape_cast %23 : vector<8xf32> to vector<1x8xf32>
    %25 = arith.addf %22, %24 : vector<1x8xf32>
    %cst_17 = arith.constant dense<0.000000e+00> : vector<8xf32>
    %26 = vector.multi_reduction <add>, %20, %cst_17 [0] : vector<64x8xf32> to vector<8xf32>
    %27 = vector.shape_cast %26 : vector<8xf32> to vector<1x8xf32>
    %28 = arith.addf %25, %27 : vector<1x8xf32>
    %29 = arith.mulf %14, %14 : vector<64x8xf32>
    %cst_18 = arith.constant dense<0.000000e+00> : vector<8xf32>
    %30 = vector.multi_reduction <add>, %29, %cst_18 [0] : vector<64x8xf32> to vector<8xf32>
    %31 = vector.shape_cast %30 : vector<8xf32> to vector<1x8xf32>
    %32 = arith.mulf %17, %17 : vector<64x8xf32>
    %cst_19 = arith.constant dense<0.000000e+00> : vector<8xf32>
    %33 = vector.multi_reduction <add>, %32, %cst_19 [0] : vector<64x8xf32> to vector<8xf32>
    %34 = vector.shape_cast %33 : vector<8xf32> to vector<1x8xf32>
    %35 = arith.addf %31, %34 : vector<1x8xf32>
    %36 = arith.mulf %20, %20 : vector<64x8xf32>
    %cst_20 = arith.constant dense<0.000000e+00> : vector<8xf32>
    %37 = vector.multi_reduction <add>, %36, %cst_20 [0] : vector<64x8xf32> to vector<8xf32>
    %38 = vector.shape_cast %37 : vector<8xf32> to vector<1x8xf32>
    %39 = arith.addf %35, %38 : vector<1x8xf32>
    %c0_21 = arith.constant 0 : index
    %c0_22 = arith.constant 0 : index
    %40 = vector.load %arg4[%c0_21, %c0_22] : memref<8x8xf32, #tpu.memory_space<vmem>>, vector<8x8xf32>
    %cst_23 = arith.constant dense<0.000000e+00> : vector<1x8xf32>
    %41 = tpu.matmul %28, %40, %cst_23 {dimension_numbers = #tpu.dot_dimension_numbers<[1], [0], [0], [1], [0, 0, 1, 1], [], []>} : vector<1x8xf32>, vector<8x8xf32>, vector<1x8xf32> -> vector<1x8xf32>
    %cst_24 = arith.constant 0.00520833349 : f32
    %42 = vector.broadcast %cst_24 : f32 to vector<1x8xf32>
    %43 = arith.mulf %41, %42 : vector<1x8xf32>
    %c0_25 = arith.constant 0 : index
    %c0_26 = arith.constant 0 : index
    %44 = vector.load %arg4[%c0_25, %c0_26] : memref<8x8xf32, #tpu.memory_space<vmem>>, vector<8x8xf32>
    %cst_27 = arith.constant dense<0.000000e+00> : vector<1x8xf32>
    %45 = tpu.matmul %39, %44, %cst_27 {dimension_numbers = #tpu.dot_dimension_numbers<[1], [0], [0], [1], [0, 0, 1, 1], [], []>} : vector<1x8xf32>, vector<8x8xf32>, vector<1x8xf32> -> vector<1x8xf32>
    %cst_28 = arith.constant 0.00520833349 : f32
    %46 = vector.broadcast %cst_28 : f32 to vector<1x8xf32>
    %47 = arith.mulf %45, %46 : vector<1x8xf32>
    %48 = arith.mulf %43, %43 : vector<1x8xf32>
    %49 = arith.subf %47, %48 : vector<1x8xf32>
    %cst_29 = arith.constant 0.000000e+00 : f32
    %50 = vector.broadcast %cst_29 : f32 to vector<1x8xf32>
    %51 = arith.maximumf %49, %50 : vector<1x8xf32>
    %cst_30 = arith.constant 9.99999974E-6 : f32
    %52 = vector.broadcast %cst_30 : f32 to vector<1x8xf32>
    %53 = arith.addf %51, %52 : vector<1x8xf32>
    %54 = math.rsqrt %53 : vector<1x8xf32>
    %c0_31 = arith.constant 0 : index
    %c0_32 = arith.constant 0 : index
    %55 = vector.load %arg5[%c0_31, %c0_32] : memref<1x8xf32, #tpu.memory_space<vmem>>, vector<1x8xf32>
    %56 = arith.mulf %54, %55 : vector<1x8xf32>
    %c0_33 = arith.constant 0 : index
    %c0_34 = arith.constant 0 : index
    %57 = vector.load %arg6[%c0_33, %c0_34] : memref<1x8xf32, #tpu.memory_space<vmem>>, vector<1x8xf32>
    %58 = arith.mulf %43, %56 : vector<1x8xf32>
    %59 = arith.subf %57, %58 : vector<1x8xf32>
    %60 = vector.broadcast %56 : vector<1x8xf32> to vector<64x8xf32>
    %61 = arith.mulf %14, %60 : vector<64x8xf32>
    %62 = vector.broadcast %59 : vector<1x8xf32> to vector<64x8xf32>
    %63 = arith.addf %61, %62 : vector<64x8xf32>
    %cst_35 = arith.constant 0.000000e+00 : f32
    %64 = vector.broadcast %cst_35 : f32 to vector<64x8xf32>
    %65 = arith.cmpf oge, %63, %64 : vector<64x8xf32>
    %cst_36 = arith.constant 2.000000e-01 : f32
    %66 = vector.broadcast %cst_36 : f32 to vector<64x8xf32>
    %67 = arith.mulf %66, %63 : vector<64x8xf32>
    %68 = arith.select %65, %63, %67 : vector<64x8xi1>, vector<64x8xf32>
    %c0_37 = arith.constant 0 : index
    %c0_38 = arith.constant 0 : index
    %69 = vector.load %arg7[%c0_37, %c0_38] : memref<8x32xf32, #tpu.memory_space<vmem>>, vector<8x32xf32>
    %cst_39 = arith.constant dense<0.000000e+00> : vector<64x32xf32>
    %70 = tpu.matmul %68, %69, %cst_39 {dimension_numbers = #tpu.dot_dimension_numbers<[1], [0], [0], [1], [0, 0, 1, 1], [], []>} : vector<64x8xf32>, vector<8x32xf32>, vector<64x32xf32> -> vector<64x32xf32>
    %c0_40 = arith.constant 0 : index
    %c0_41 = arith.constant 0 : index
    %71 = vector.load %arg8[%c0_40, %c0_41] : memref<1x32xf32, #tpu.memory_space<vmem>>, vector<1x32xf32>
    %72 = vector.broadcast %71 : vector<1x32xf32> to vector<64x32xf32>
    %73 = arith.addf %70, %72 : vector<64x32xf32>
    %cst_42 = arith.constant 0.000000e+00 : f32
    %74 = vector.broadcast %cst_42 : f32 to vector<64x32xf32>
    %75 = arith.subf %74, %73 : vector<64x32xf32>
    %76 = math.exp %75 : vector<64x32xf32>
    %cst_43 = arith.constant 1.000000e+00 : f32
    %77 = vector.broadcast %cst_43 : f32 to vector<64x32xf32>
    %78 = arith.addf %77, %76 : vector<64x32xf32>
    %cst_44 = arith.constant 1.000000e+00 : f32
    %79 = vector.broadcast %cst_44 : f32 to vector<64x32xf32>
    %80 = arith.divf %79, %78 : vector<64x32xf32>
    %81 = vector.shape_cast %80 : vector<64x32xf32> to vector<8x8x32xf32>
    %c0_45 = arith.constant 0 : index
    %c0_46 = arith.constant 0 : index
    %c0_47 = arith.constant 0 : index
    %82 = vector.load %arg17[%c0_45, %c0_46, %c0_47] : memref<8x8x32xf32, #tpu.memory_space<vmem>>, vector<8x8x32xf32>
    tpu.vector_store %arg17[%c0_45, %c0_46, %c0_47], %81 {strides = array<i32>} : memref<8x8x32xf32, #tpu.memory_space<vmem>>, vector<8x8x32xf32>,
    %83 = vector.broadcast %56 : vector<1x8xf32> to vector<64x8xf32>
    %84 = arith.mulf %17, %83 : vector<64x8xf32>
    %85 = vector.broadcast %59 : vector<1x8xf32> to vector<64x8xf32>
    %86 = arith.addf %84, %85 : vector<64x8xf32>
    %cst_48 = arith.constant 0.000000e+00 : f32
    %87 = vector.broadcast %cst_48 : f32 to vector<64x8xf32>
    %88 = arith.cmpf oge, %86, %87 : vector<64x8xf32>
    %cst_49 = arith.constant 2.000000e-01 : f32
    %89 = vector.broadcast %cst_49 : f32 to vector<64x8xf32>
    %90 = arith.mulf %89, %86 : vector<64x8xf32>
    %91 = arith.select %88, %86, %90 : vector<64x8xi1>, vector<64x8xf32>
    %c0_50 = arith.constant 0 : index
    %c0_51 = arith.constant 0 : index
    %92 = vector.load %arg9[%c0_50, %c0_51] : memref<8x32xf32, #tpu.memory_space<vmem>>, vector<8x32xf32>
    %cst_52 = arith.constant dense<0.000000e+00> : vector<64x32xf32>
    %93 = tpu.matmul %91, %92, %cst_52 {dimension_numbers = #tpu.dot_dimension_numbers<[1], [0], [0], [1], [0, 0, 1, 1], [], []>} : vector<64x8xf32>, vector<8x32xf32>, vector<64x32xf32> -> vector<64x32xf32>
    %c0_53 = arith.constant 0 : index
    %c0_54 = arith.constant 0 : index
    %94 = vector.load %arg10[%c0_53, %c0_54] : memref<1x32xf32, #tpu.memory_space<vmem>>, vector<1x32xf32>
    %95 = vector.broadcast %94 : vector<1x32xf32> to vector<64x32xf32>
    %96 = arith.addf %93, %95 : vector<64x32xf32>
    %cst_55 = arith.constant 0.000000e+00 : f32
    %97 = vector.broadcast %cst_55 : f32 to vector<64x32xf32>
    %98 = arith.subf %97, %96 : vector<64x32xf32>
    %99 = math.exp %98 : vector<64x32xf32>
    %cst_56 = arith.constant 1.000000e+00 : f32
    %100 = vector.broadcast %cst_56 : f32 to vector<64x32xf32>
    %101 = arith.addf %100, %99 : vector<64x32xf32>
    %cst_57 = arith.constant 1.000000e+00 : f32
    %102 = vector.broadcast %cst_57 : f32 to vector<64x32xf32>
    %103 = arith.divf %102, %101 : vector<64x32xf32>
    %104 = vector.shape_cast %103 : vector<64x32xf32> to vector<8x8x32xf32>
    %105 = vector.broadcast %56 : vector<1x8xf32> to vector<64x8xf32>
    %106 = arith.mulf %20, %105 : vector<64x8xf32>
    %107 = vector.broadcast %59 : vector<1x8xf32> to vector<64x8xf32>
    %108 = arith.addf %106, %107 : vector<64x8xf32>
    %cst_58 = arith.constant 0.000000e+00 : f32
    %109 = vector.broadcast %cst_58 : f32 to vector<64x8xf32>
    %110 = arith.cmpf oge, %108, %109 : vector<64x8xf32>
    %cst_59 = arith.constant 2.000000e-01 : f32
    %111 = vector.broadcast %cst_59 : f32 to vector<64x8xf32>
    %112 = arith.mulf %111, %108 : vector<64x8xf32>
    %113 = arith.select %110, %108, %112 : vector<64x8xi1>, vector<64x8xf32>
    %c0_60 = arith.constant 0 : index
    %c0_61 = arith.constant 0 : index
    %114 = vector.load %arg11[%c0_60, %c0_61] : memref<8x32xf32, #tpu.memory_space<vmem>>, vector<8x32xf32>
    %cst_62 = arith.constant dense<0.000000e+00> : vector<64x32xf32>
    %115 = tpu.matmul %113, %114, %cst_62 {dimension_numbers = #tpu.dot_dimension_numbers<[1], [0], [0], [1], [0, 0, 1, 1], [], []>} : vector<64x8xf32>, vector<8x32xf32>, vector<64x32xf32> -> vector<64x32xf32>
    %c0_63 = arith.constant 0 : index
    %c0_64 = arith.constant 0 : index
    %116 = vector.load %arg12[%c0_63, %c0_64] : memref<1x32xf32, #tpu.memory_space<vmem>>, vector<1x32xf32>
    %117 = vector.broadcast %116 : vector<1x32xf32> to vector<64x32xf32>
    %118 = arith.addf %115, %117 : vector<64x32xf32>
    %cst_65 = arith.constant 0.000000e+00 : f32
    %119 = vector.broadcast %cst_65 : f32 to vector<64x32xf32>
    %120 = arith.subf %119, %118 : vector<64x32xf32>
    %121 = math.exp %120 : vector<64x32xf32>
    %cst_66 = arith.constant 1.000000e+00 : f32
    %122 = vector.broadcast %cst_66 : f32 to vector<64x32xf32>
    %123 = arith.addf %122, %121 : vector<64x32xf32>
    %cst_67 = arith.constant 1.000000e+00 : f32
    %124 = vector.broadcast %cst_67 : f32 to vector<64x32xf32>
    %125 = arith.divf %124, %123 : vector<64x32xf32>
    %126 = vector.shape_cast %125 : vector<64x32xf32> to vector<8x8x32xf32>
    %c0_68 = arith.constant 0 : index
    %c0_69 = arith.constant 0 : index
    %c0_70 = arith.constant 0 : index
    %127 = vector.load %arg18[%c0_68, %c0_69, %c0_70] : memref<8x8x32xf32, #tpu.memory_space<vmem>>, vector<8x8x32xf32>
    tpu.vector_store %arg18[%c0_68, %c0_69, %c0_70], %126 {strides = array<i32>} : memref<8x8x32xf32, #tpu.memory_space<vmem>>, vector<8x8x32xf32>,
    %c0_71 = arith.constant 0 : index
    %c0_72 = arith.constant 0 : index
    %128 = vector.load %arg13[%c0_71, %c0_72] : memref<64x8xf32, #tpu.memory_space<vmem>>, vector<64x8xf32>
    %c0_i32_73 = arith.constant 0 : i32
    %c8_i32_74 = arith.constant 8 : i32
    %129 = arith.addi %c0_i32_73, %c8_i32_74 : i32
    %c1_i32_75 = arith.constant 1 : i32
    scf.for %arg19 = %c0_i32_73 to %129 step %c1_i32_75  : i32 {
      %c0_77 = arith.constant 0 : index
      %130 = arith.index_cast %arg19 : i32 to index
      %c0_78 = arith.constant 0 : index
      %c0_79 = arith.constant 0 : index
      %c0_80 = arith.constant 0 : index
      %131 = vector.load %arg1[%c0_77, %130, %c0_78, %c0_79, %c0_80] : memref<1x8x8x8x32xf32, #tpu.memory_space<vmem>>, vector<1x1x8x8x32xf32>
      %132 = vector.shape_cast %131 : vector<1x1x8x8x32xf32> to vector<1x8x8x32xf32>
      %133 = vector.shape_cast %132 : vector<1x8x8x32xf32> to vector<8x8x32xf32>
      %134 = arith.index_cast %arg19 : i32 to index
      %c0_81 = arith.constant 0 : index
      %c0_82 = arith.constant 0 : index
      %135 = vector.load %arg17[%134, %c0_81, %c0_82] : memref<8x8x32xf32, #tpu.memory_space<vmem>>, vector<1x8x32xf32>
      %136 = vector.shape_cast %135 : vector<1x8x32xf32> to vector<8x32xf32>
      %137 = arith.index_cast %arg19 : i32 to index
      %c0_83 = arith.constant 0 : index
      %c0_84 = arith.constant 0 : index
      %138 = vector.load %arg18[%137, %c0_83, %c0_84] : memref<8x8x32xf32, #tpu.memory_space<vmem>>, vector<1x8x32xf32>
      %139 = vector.shape_cast %138 : vector<1x8x32xf32> to vector<8x32xf32>
      %cst_85 = arith.constant dense<0.000000e+00> : vector<64x32xf32>
      %140 = tpu.matmul %128, %139, %cst_85 {dimension_numbers = #tpu.dot_dimension_numbers<[1], [0], [0], [1], [0, 0, 1, 1], [], []>} : vector<64x8xf32>, vector<8x32xf32>, vector<64x32xf32> -> vector<64x32xf32>
      %141 = vector.shape_cast %140 : vector<64x32xf32> to vector<8x8x32xf32>
      %142 = vector.shape_cast %136 : vector<8x32xf32> to vector<1x8x32xf32>
      %143 = vector.broadcast %142 : vector<1x8x32xf32> to vector<8x8x32xf32>
      %144 = arith.mulf %104, %143 : vector<8x8x32xf32>
      %145 = arith.mulf %144, %141 : vector<8x8x32xf32>
      %146 = arith.addf %133, %145 : vector<8x8x32xf32>
      %147 = vector.shape_cast %146 : vector<8x8x32xf32> to vector<1x8x8x32xf32>
      %c0_86 = arith.constant 0 : index
      %148 = arith.index_cast %arg19 : i32 to index
      %c0_87 = arith.constant 0 : index
      %c0_88 = arith.constant 0 : index
      %c0_89 = arith.constant 0 : index
      %149 = vector.load %arg14[%c0_86, %148, %c0_87, %c0_88, %c0_89] : memref<1x8x8x8x32xf32, #tpu.memory_space<vmem>>, vector<1x1x8x8x32xf32>
      %150 = vector.shape_cast %149 : vector<1x1x8x8x32xf32> to vector<1x8x8x32xf32>
      %151 = vector.shape_cast %147 : vector<1x8x8x32xf32> to vector<1x1x8x8x32xf32>
      tpu.vector_store %arg14[%c0_86, %148, %c0_87, %c0_88, %c0_89], %151 {strides = array<i32>} : memref<1x8x8x8x32xf32, #tpu.memory_space<vmem>>, vector<1x1x8x8x32xf32>,
    }
    %c8_i32_76 = arith.constant 8 : i32
    return
  }
  func.func @transform_0(%arg0: i32) -> (i32, i32, i32, i32, i32) {
    %c0_i32 = arith.constant 0 : i32
    %c0_i32_0 = arith.constant 0 : i32
    %c0_i32_1 = arith.constant 0 : i32
    %c0_i32_2 = arith.constant 0 : i32
    %c0_i32_3 = arith.constant 0 : i32
    return %arg0, %c0_i32, %c0_i32_0, %c0_i32_1, %c0_i32_2 : i32, i32, i32, i32, i32
  }
  func.func @transform_1(%arg0: i32) -> (i32, i32) {
    %c0_i32 = arith.constant 0 : i32
    %c0_i32_0 = arith.constant 0 : i32
    %c0_i32_1 = arith.constant 0 : i32
    return %c0_i32, %c0_i32_0 : i32, i32
  }
  func.func @transform_2(%arg0: i32) -> (i32, i32) {
    %c0_i32 = arith.constant 0 : i32
    %c0_i32_0 = arith.constant 0 : i32
    %c0_i32_1 = arith.constant 0 : i32
    return %c0_i32, %c0_i32_0 : i32, i32
  }
  func.func @transform_3(%arg0: i32) -> (i32, i32) {
    %c0_i32 = arith.constant 0 : i32
    %c0_i32_0 = arith.constant 0 : i32
    %c0_i32_1 = arith.constant 0 : i32
    return %c0_i32, %c0_i32_0 : i32, i32
  }
  func.func @transform_4(%arg0: i32) -> (i32, i32) {
    %c0_i32 = arith.constant 0 : i32
    %c0_i32_0 = arith.constant 0 : i32
    %c0_i32_1 = arith.constant 0 : i32
    return %c0_i32, %c0_i32_0 : i32, i32
  }
  func.func @transform_5(%arg0: i32) -> (i32, i32) {
    %c0_i32 = arith.constant 0 : i32
    %c0_i32_0 = arith.constant 0 : i32
    %c0_i32_1 = arith.constant 0 : i32
    return %c0_i32, %c0_i32_0 : i32, i32
  }
  func.func @transform_6(%arg0: i32) -> (i32, i32) {
    %c0_i32 = arith.constant 0 : i32
    %c0_i32_0 = arith.constant 0 : i32
    %c0_i32_1 = arith.constant 0 : i32
    return %c0_i32, %c0_i32_0 : i32, i32
  }
  func.func @transform_7(%arg0: i32) -> (i32, i32) {
    %c0_i32 = arith.constant 0 : i32
    %c0_i32_0 = arith.constant 0 : i32
    %c0_i32_1 = arith.constant 0 : i32
    return %c0_i32, %c0_i32_0 : i32, i32
  }
  func.func @transform_8(%arg0: i32) -> (i32, i32) {
    %c0_i32 = arith.constant 0 : i32
    %c0_i32_0 = arith.constant 0 : i32
    %c0_i32_1 = arith.constant 0 : i32
    return %c0_i32, %c0_i32_0 : i32, i32
  }
  func.func @transform_9(%arg0: i32) -> (i32, i32) {
    %c0_i32 = arith.constant 0 : i32
    %c0_i32_0 = arith.constant 0 : i32
    %c0_i32_1 = arith.constant 0 : i32
    return %c0_i32, %c0_i32_0 : i32, i32
  }
  func.func @transform_10(%arg0: i32) -> (i32, i32) {
    %c0_i32 = arith.constant 0 : i32
    %c0_i32_0 = arith.constant 0 : i32
    %c0_i32_1 = arith.constant 0 : i32
    return %c0_i32, %c0_i32_0 : i32, i32
  }
  func.func @transform_11(%arg0: i32) -> (i32, i32) {
    %c0_i32 = arith.constant 0 : i32
    %c0_i32_0 = arith.constant 0 : i32
    %c0_i32_1 = arith.constant 0 : i32
    return %c0_i32, %c0_i32_0 : i32, i32
  }
  func.func @transform_12(%arg0: i32) -> (i32, i32) {
    %c0_i32 = arith.constant 0 : i32
    %c0_i32_0 = arith.constant 0 : i32
    %c0_i32_1 = arith.constant 0 : i32
    return %c0_i32, %c0_i32_0 : i32, i32
  }
  func.func @transform_13(%arg0: i32) -> (i32, i32, i32, i32, i32) {
    %c0_i32 = arith.constant 0 : i32
    %c0_i32_0 = arith.constant 0 : i32
    %c0_i32_1 = arith.constant 0 : i32
    %c0_i32_2 = arith.constant 0 : i32
    %c0_i32_3 = arith.constant 0 : i32
    return %arg0, %c0_i32, %c0_i32_0, %c0_i32_1, %c0_i32_2 : i32, i32, i32, i32, i32
  }
}

</mosaic_0001>

<llo_original>
// kernel: hamburger_forward.1
$region0: #{hamburger_forward.1}
  #allocation0 [shape = 'u32[]', space=smem, size = 0x4, offset = 0x4, fixed_abs, tag = 'smem constant byte address 0x4 - core index']
  #allocation1 [shape = 'u32[144,128]{1,0:T(1,128)}', space=vmem, size = 0x12000, scoped, tag = 'internal scratch']
  #allocation2 [shape = 'f32[8,8,32]{2,1,0:T(8,128)}', space=vmem, size = 0x8000, scoped, tag = 'scratch operand']
  #allocation3 [shape = 'f32[8,8,32]{2,1,0:T(8,128)}', space=vmem, size = 0x8000, scoped, tag = 'scratch operand']
  #allocation4 [shape = 'f32[8,8,32]{2,1,0:T(8,128)}', space=vmem, size = 0x8000, scoped, tag = 'scratch operand']
  #allocation5 [shape = 'f32[8,8,32]{2,1,0:T(8,128)}', space=vmem, size = 0x8000, scoped, tag = 'scratch operand']
  %s0 = inlined_call_operand.hbm [shape: f32[2,8,8,8,32], index: 0, kind: input, shape index: {}]
  %s1 = inlined_call_operand.vmem [shape: f32[32,8], index: 1, kind: input, shape index: {}]
  %s2 = inlined_call_operand.vmem [shape: f32[1,8], index: 2, kind: input, shape index: {}]
  %s3 = inlined_call_operand.vmem [shape: f32[8,8], index: 3, kind: input, shape index: {}]
  %s4 = inlined_call_operand.vmem [shape: f32[1,8], index: 4, kind: input, shape index: {}]
  %s5 = inlined_call_operand.vmem [shape: f32[1,8], index: 5, kind: input, shape index: {}]
  %s6 = inlined_call_operand.vmem [shape: f32[8,32], index: 6, kind: input, shape index: {}]
  %s7 = inlined_call_operand.vmem [shape: f32[1,32], index: 7, kind: input, shape index: {}]
  %s8 = inlined_call_operand.vmem [shape: f32[8,32], index: 8, kind: input, shape index: {}]
  %s9 = inlined_call_operand.vmem [shape: f32[1,32], index: 9, kind: input, shape index: {}]
  %s10 = inlined_call_operand.vmem [shape: f32[8,32], index: 10, kind: input, shape index: {}]
  %s11 = inlined_call_operand.vmem [shape: f32[1,32], index: 11, kind: input, shape index: {}]
  %s12 = inlined_call_operand.vmem [shape: f32[64,8], index: 12, kind: input, shape index: {}]
  %s13 = inlined_call_operand.hbm [shape: f32[2,8,8,8,32], index: 13, kind: output, shape index: {}]
  %s14 = sld [smem:[#allocation0]]
  $region103: #{hamburger_forward.1} parent=0
    _
  %s16 = ssub.s32 1, %s14
  %s17 = scalar_select 0, %s16, %s14
  $region1: #{hamburger_forward.1} parent=0
    #allocation6 [shape = 'u8[524288]{0}', space=vmem, size = 0x80000, scoped, tag = 'input window, operand 0']
    #allocation7 [shape = 's32[2]{0}', space=sflag, size = 0x8, scoped, tag = 'scoped memory for hamburger_forward.1']
    #allocation8 [shape = 's32[2]{0}', space=sflag, size = 0x8, scoped, tag = 'scoped memory for hamburger_forward.1']
    #allocation9 [shape = 'u8[524288]{0}', space=vmem, size = 0x80000, scoped, tag = 'output window, operand 0']
    %18 = vsyncpa [#allocation7], 0
    %s19 = scalar_lea.sflag [#allocation7], 1
    %20 = vsyncpa %s19, 0
    %21 = vsyncpa [#allocation8], 0
    %s22 = scalar_lea.sflag [#allocation8], 1
    %23 = vsyncpa %s22, 0
    loop: start=0, step=1, limit=4
    $region2: #{hamburger_forward.1} parent=1 // loop_pre_header
      _
    $region3: #{hamburger_forward.1} parent=1 // loop_header
      %s25 = sphi 0, %s29
      %p26 = scmp.ge.s32.totalorder %s25, 4
      %s35 = sphi 0, %s37
      %s38 = sphi 0, %s35
      %s39 = sphi 0, %s38
      %s55 = sphi 0, %s39
      %s59 = sphi 0, %s59
      %s61 = sphi 0, %s59
      %s62 = sphi 0, %s61
      %s76 = sphi 0, %s62
      %s80 = sphi 0, %s80
      %s82 = sphi 0, %s80
      %s83 = sphi 0, %s82
      %s97 = sphi 0, %s83
      %s101 = sphi 0, %s101
      %s103 = sphi 0, %s101
      %s104 = sphi 0, %s103
      %s118 = sphi 0, %s104
      %s122 = sphi 0, %s122
      %s124 = sphi 0, %s122
      %s125 = sphi 0, %s124
      %s139 = sphi 0, %s125
      %s143 = sphi 0, %s143
      %s145 = sphi 0, %s143
      %s146 = sphi 0, %s145
      %s160 = sphi 0, %s146
      %s164 = sphi 0, %s164
      %s166 = sphi 0, %s164
      %s167 = sphi 0, %s166
      %s181 = sphi 0, %s167
      %s185 = sphi 0, %s185
      %s187 = sphi 0, %s185
      %s188 = sphi 0, %s187
      %s202 = sphi 0, %s188
      %s206 = sphi 0, %s206
      %s208 = sphi 0, %s206
      %s209 = sphi 0, %s208
      %s223 = sphi 0, %s209
      %s227 = sphi 0, %s227
      %s229 = sphi 0, %s227
      %s230 = sphi 0, %s229
      %s244 = sphi 0, %s230
      %s248 = sphi 0, %s248
      %s250 = sphi 0, %s248
      %s251 = sphi 0, %s250
      %s265 = sphi 0, %s251
      %s269 = sphi 0, %s269
      %s271 = sphi 0, %s269
      %s272 = sphi 0, %s271
      %s286 = sphi 0, %s272
      %s290 = sphi 0, %s290
      %s292 = sphi 0, %s290
      %s293 = sphi 0, %s292
      %s307 = sphi 0, %s293
      %s313 = sphi 0, %s315
      %s316 = sphi 0, %s313
      %s317 = sphi 0, %s316
      %s333 = sphi 0, %s317
    $region4: #{hamburger_forward.1} parent=1 // loop_header_branch
      %28 = sbr.rel (%p26) target = $region8
    $region5: #{hamburger_forward.1} parent=1 // loop_body
      %s30 = ssub.s32 %s25, 1
      %s31 = ssub.s32 %s25, 2
      %s32 = sadd.s32 %s25, 1
      %s33 = ssub.s32 %s25, %s32
      %p34 = scmp.eq.s32.totalorder %s33, 0
      %s36 = sadd.s32 %s35, 1
      %s37 = scalar_select %p34, %s35, %s36
      %p40 = pneg %p34
      %p41 = scmp.eq.s32.totalorder %s25, 1
      %p42 = por %p40, %p41
      %p43 = scmp.ne.s32.totalorder %s35, %s38
      %p44 = scmp.eq.s32.totalorder %s25, 0
      %p45 = por %p43, %p44
      %p46 = scmp.ne.s32.totalorder %s35, %s38
      %p47 = scmp.eq.s32.totalorder %s30, 1
      %p48 = por %p46, %p47
      %p49 = scmp.ne.s32.totalorder %s38, %s39
      %p50 = scmp.eq.s32.totalorder %s30, 0
      %p51 = por %p49, %p50
      %p52 = scmp.ne.s32.totalorder %s38, %s39
      %p53 = scmp.eq.s32.totalorder %s31, 1
      %p54 = por %p52, %p53
      %p56 = scmp.ne.s32.totalorder %s39, %s55
      %p57 = scmp.eq.s32.totalorder %s31, 0
      %p58 = por %p56, %p57
      %s60 = sadd.s32 %s59, 1
      %p63 = scmp.eq.s32.totalorder %s25, 1
      %p64 = scmp.ne.s32.totalorder %s59, %s61
      %p65 = scmp.eq.s32.totalorder %s25, 0
      %p66 = por %p64, %p65
      %p67 = scmp.ne.s32.totalorder %s59, %s61
      %p68 = scmp.eq.s32.totalorder %s30, 1
      %p69 = por %p67, %p68
      %p70 = scmp.ne.s32.totalorder %s61, %s62
      %p71 = scmp.eq.s32.totalorder %s30, 0
      %p72 = por %p70, %p71
      %p73 = scmp.ne.s32.totalorder %s61, %s62
      %p74 = scmp.eq.s32.totalorder %s31, 1
      %p75 = por %p73, %p74
      %p77 = scmp.ne.s32.totalorder %s62, %s76
      %p78 = scmp.eq.s32.totalorder %s31, 0
      %p79 = por %p77, %p78
      %s81 = sadd.s32 %s80, 1
      %p84 = scmp.eq.s32.totalorder %s25, 1
      %p85 = scmp.ne.s32.totalorder %s80, %s82
      %p86 = scmp.eq.s32.totalorder %s25, 0
      %p87 = por %p85, %p86
      %p88 = scmp.ne.s32.totalorder %s80, %s82
      %p89 = scmp.eq.s32.totalorder %s30, 1
      %p90 = por %p88, %p89
      %p91 = scmp.ne.s32.totalorder %s82, %s83
      %p92 = scmp.eq.s32.totalorder %s30, 0
      %p93 = por %p91, %p92
      %p94 = scmp.ne.s32.totalorder %s82, %s83
      %p95 = scmp.eq.s32.totalorder %s31, 1
      %p96 = por %p94, %p95
      %p98 = scmp.ne.s32.totalorder %s83, %s97
      %p99 = scmp.eq.s32.totalorder %s31, 0
      %p100 = por %p98, %p99
      %s102 = sadd.s32 %s101, 1
      %p105 = scmp.eq.s32.totalorder %s25, 1
      %p106 = scmp.ne.s32.totalorder %s101, %s103
      %p107 = scmp.eq.s32.totalorder %s25, 0
      %p108 = por %p106, %p107
      %p109 = scmp.ne.s32.totalorder %s101, %s103
      %p110 = scmp.eq.s32.totalorder %s30, 1
      %p111 = por %p109, %p110
      %p112 = scmp.ne.s32.totalorder %s103, %s104
      %p113 = scmp.eq.s32.totalorder %s30, 0
      %p114 = por %p112, %p113
      %p115 = scmp.ne.s32.totalorder %s103, %s104
      %p116 = scmp.eq.s32.totalorder %s31, 1
      %p117 = por %p115, %p116
      %p119 = scmp.ne.s32.totalorder %s104, %s118
      %p120 = scmp.eq.s32.totalorder %s31, 0
      %p121 = por %p119, %p120
      %s123 = sadd.s32 %s122, 1
      %p126 = scmp.eq.s32.totalorder %s25, 1
      %p127 = scmp.ne.s32.totalorder %s122, %s124
      %p128 = scmp.eq.s32.totalorder %s25, 0
      %p129 = por %p127, %p128
      %p130 = scmp.ne.s32.totalorder %s122, %s124
      %p131 = scmp.eq.s32.totalorder %s30, 1
      %p132 = por %p130, %p131
      %p133 = scmp.ne.s32.totalorder %s124, %s125
      %p134 = scmp.eq.s32.totalorder %s30, 0
      %p135 = por %p133, %p134
      %p136 = scmp.ne.s32.totalorder %s124, %s125
      %p137 = scmp.eq.s32.totalorder %s31, 1
      %p138 = por %p136, %p137
      %p140 = scmp.ne.s32.totalorder %s125, %s139
      %p141 = scmp.eq.s32.totalorder %s31, 0
      %p142 = por %p140, %p141
      %s144 = sadd.s32 %s143, 1
      %p147 = scmp.eq.s32.totalorder %s25, 1
      %p148 = scmp.ne.s32.totalorder %s143, %s145
      %p149 = scmp.eq.s32.totalorder %s25, 0
      %p150 = por %p148, %p149
      %p151 = scmp.ne.s32.totalorder %s143, %s145
      %p152 = scmp.eq.s32.totalorder %s30, 1
      %p153 = por %p151, %p152
      %p154 = scmp.ne.s32.totalorder %s145, %s146
      %p155 = scmp.eq.s32.totalorder %s30, 0
      %p156 = por %p154, %p155
      %p157 = scmp.ne.s32.totalorder %s145, %s146
      %p158 = scmp.eq.s32.totalorder %s31, 1
      %p159 = por %p157, %p158
      %p161 = scmp.ne.s32.totalorder %s146, %s160
      %p162 = scmp.eq.s32.totalorder %s31, 0
      %p163 = por %p161, %p162
      %s165 = sadd.s32 %s164, 1
      %p168 = scmp.eq.s32.totalorder %s25, 1
      %p169 = scmp.ne.s32.totalorder %s164, %s166
      %p170 = scmp.eq.s32.totalorder %s25, 0
      %p171 = por %p169, %p170
      %p172 = scmp.ne.s32.totalorder %s164, %s166
      %p173 = scmp.eq.s32.totalorder %s30, 1
      %p174 = por %p172, %p173
      %p175 = scmp.ne.s32.totalorder %s166, %s167
      %p176 = scmp.eq.s32.totalorder %s30, 0
      %p177 = por %p175, %p176
      %p178 = scmp.ne.s32.totalorder %s166, %s167
      %p179 = scmp.eq.s32.totalorder %s31, 1
      %p180 = por %p178, %p179
      %p182 = scmp.ne.s32.totalorder %s167, %s181
      %p183 = scmp.eq.s32.totalorder %s31, 0
      %p184 = por %p182, %p183
      %s186 = sadd.s32 %s185, 1
      %p189 = scmp.eq.s32.totalorder %s25, 1
      %p190 = scmp.ne.s32.totalorder %s185, %s187
      %p191 = scmp.eq.s32.totalorder %s25, 0
      %p192 = por %p190, %p191
      %p193 = scmp.ne.s32.totalorder %s185, %s187
      %p194 = scmp.eq.s32.totalorder %s30, 1
      %p195 = por %p193, %p194
      %p196 = scmp.ne.s32.totalorder %s187, %s188
      %p197 = scmp.eq.s32.totalorder %s30, 0
      %p198 = por %p196, %p197
      %p199 = scmp.ne.s32.totalorder %s187, %s188
      %p200 = scmp.eq.s32.totalorder %s31, 1
      %p201 = por %p199, %p200
      %p203 = scmp.ne.s32.totalorder %s188, %s202
      %p204 = scmp.eq.s32.totalorder %s31, 0
      %p205 = por %p203, %p204
      %s207 = sadd.s32 %s206, 1
      %p210 = scmp.eq.s32.totalorder %s25, 1
      %p211 = scmp.ne.s32.totalorder %s206, %s208
      %p212 = scmp.eq.s32.totalorder %s25, 0
      %p213 = por %p211, %p212
      %p214 = scmp.ne.s32.totalorder %s206, %s208
      %p215 = scmp.eq.s32.totalorder %s30, 1
      %p216 = por %p214, %p215
      %p217 = scmp.ne.s32.totalorder %s208, %s209
      %p218 = scmp.eq.s32.totalorder %s30, 0
      %p219 = por %p217, %p218
      %p220 = scmp.ne.s32.totalorder %s208, %s209
      %p221 = scmp.eq.s32.totalorder %s31, 1
      %p222 = por %p220, %p221
      %p224 = scmp.ne.s32.totalorder %s209, %s223
      %p225 = scmp.eq.s32.totalorder %s31, 0
      %p226 = por %p224, %p225
      %s228 = sadd.s32 %s227, 1
      %p231 = scmp.eq.s32.totalorder %s25, 1
      %p232 = scmp.ne.s32.totalorder %s227, %s229
      %p233 = scmp.eq.s32.totalorder %s25, 0
      %p234 = por %p232, %p233
      %p235 = scmp.ne.s32.totalorder %s227, %s229
      %p236 = scmp.eq.s32.totalorder %s30, 1
      %p237 = por %p235, %p236
      %p238 = scmp.ne.s32.totalorder %s229, %s230
      %p239 = scmp.eq.s32.totalorder %s30, 0
      %p240 = por %p238, %p239
      %p241 = scmp.ne.s32.totalorder %s229, %s230
      %p242 = scmp.eq.s32.totalorder %s31, 1
      %p243 = por %p241, %p242
      %p245 = scmp.ne.s32.totalorder %s230, %s244
      %p246 = scmp.eq.s32.totalorder %s31, 0
      %p247 = por %p245, %p246
      %s249 = sadd.s32 %s248, 1
      %p252 = scmp.eq.s32.totalorder %s25, 1
      %p253 = scmp.ne.s32.totalorder %s248, %s250
      %p254 = scmp.eq.s32.totalorder %s25, 0
      %p255 = por %p253, %p254
      %p256 = scmp.ne.s32.totalorder %s248, %s250
      %p257 = scmp.eq.s32.totalorder %s30, 1
      %p258 = por %p256, %p257
      %p259 = scmp.ne.s32.totalorder %s250, %s251
      %p260 = scmp.eq.s32.totalorder %s30, 0
      %p261 = por %p259, %p260
      %p262 = scmp.ne.s32.totalorder %s250, %s251
      %p263 = scmp.eq.s32.totalorder %s31, 1
      %p264 = por %p262, %p263
      %p266 = scmp.ne.s32.totalorder %s251, %s265
      %p267 = scmp.eq.s32.totalorder %s31, 0
      %p268 = por %p266, %p267
      %s270 = sadd.s32 %s269, 1
      %p273 = scmp.eq.s32.totalorder %s25, 1
      %p274 = scmp.ne.s32.totalorder %s269, %s271
      %p275 = scmp.eq.s32.totalorder %s25, 0
      %p276 = por %p274, %p275
      %p277 = scmp.ne.s32.totalorder %s269, %s271
      %p278 = scmp.eq.s32.totalorder %s30, 1
      %p279 = por %p277, %p278
      %p280 = scmp.ne.s32.totalorder %s271, %s272
      %p281 = scmp.eq.s32.totalorder %s30, 0
      %p282 = por %p280, %p281
      %p283 = scmp.ne.s32.totalorder %s271, %s272
      %p284 = scmp.eq.s32.totalorder %s31, 1
      %p285 = por %p283, %p284
      %p287 = scmp.ne.s32.totalorder %s272, %s286
      %p288 = scmp.eq.s32.totalorder %s31, 0
      %p289 = por %p287, %p288
      %s291 = sadd.s32 %s290, 1
      %p294 = scmp.eq.s32.totalorder %s25, 1
      %p295 = scmp.ne.s32.totalorder %s290, %s292
      %p296 = scmp.eq.s32.totalorder %s25, 0
      %p297 = por %p295, %p296
      %p298 = scmp.ne.s32.totalorder %s290, %s292
      %p299 = scmp.eq.s32.totalorder %s30, 1
      %p300 = por %p298, %p299
      %p301 = scmp.ne.s32.totalorder %s292, %s293
      %p302 = scmp.eq.s32.totalorder %s30, 0
      %p303 = por %p301, %p302
      %p304 = scmp.ne.s32.totalorder %s292, %s293
      %p305 = scmp.eq.s32.totalorder %s31, 1
      %p306 = por %p304, %p305
      %p308 = scmp.ne.s32.totalorder %s293, %s307
      %p309 = scmp.eq.s32.totalorder %s31, 0
      %p310 = por %p308, %p309
      %s311 = ssub.s32 %s25, %s32
      %p312 = scmp.eq.s32.totalorder %s311, 0
      %s314 = sadd.s32 %s313, 1
      %s315 = scalar_select %p312, %s313, %s314
      %p318 = pneg %p312
      %p319 = scmp.eq.s32.totalorder %s25, 1
      %p320 = por %p318, %p319
      %p321 = scmp.ne.s32.totalorder %s313, %s316
      %p322 = scmp.eq.s32.totalorder %s25, 0
      %p323 = por %p321, %p322
      %p324 = scmp.ne.s32.totalorder %s313, %s316
      %p325 = scmp.eq.s32.totalorder %s30, 1
      %p326 = por %p324, %p325
      %p327 = scmp.ne.s32.totalorder %s316, %s317
      %p328 = scmp.eq.s32.totalorder %s30, 0
      %p329 = por %p327, %p328
      %p330 = scmp.ne.s32.totalorder %s316, %s317
      %p331 = scmp.eq.s32.totalorder %s31, 1
      %p332 = por %p330, %p331
      %p334 = scmp.ne.s32.totalorder %s317, %s333
      %p335 = scmp.eq.s32.totalorder %s31, 0
      %p336 = por %p334, %p335
      %p337 = scmp.le.s32.totalorder 1, %s25
      %p338 = scmp.lt.s32.totalorder %s25, 3
      %p339 = pnand %p337, %p338
      %p340 = pneg %p339
      // Predicated region
      $region9: #{hamburger_forward.1} parent=5 // pred_check
        _
      $region10: #{hamburger_forward.1} parent=5 // pred_check_branch
        %342 = sbr.rel (%p339) target = $region12
      $region11: #{hamburger_forward.1} parent=5 // pred_region
        %s343 = ssub.s32 %s25, 1
        // Predicated region
        $region13: #{hamburger_forward.1} parent=11 // pred_check
          %p344 = pneg %p72
        $region14: #{hamburger_forward.1} parent=11 // pred_check_branch
          %346 = sbr.rel (%p344) target = $region16
        $region15: #{hamburger_forward.1} parent=11 // pred_region
          _
        $region16: #{hamburger_forward.1} parent=11 // pred_fallthru
          _
        // Predicated region
        $region17: #{hamburger_forward.1} parent=11 // pred_check
          %p347 = pneg %p93
        $region18: #{hamburger_forward.1} parent=11 // pred_check_branch
          %349 = sbr.rel (%p347) target = $region20
        $region19: #{hamburger_forward.1} parent=11 // pred_region
          _
        $region20: #{hamburger_forward.1} parent=11 // pred_fallthru
          _
        // Predicated region
        $region21: #{hamburger_forward.1} parent=11 // pred_check
          %p350 = pneg %p114
        $region22: #{hamburger_forward.1} parent=11 // pred_check_branch
          %352 = sbr.rel (%p350) target = $region24
        $region23: #{hamburger_forward.1} parent=11 // pred_region
          _
        $region24: #{hamburger_forward.1} parent=11 // pred_fallthru
          _
        // Predicated region
        $region25: #{hamburger_forward.1} parent=11 // pred_check
          %p353 = pneg %p135
        $region26: #{hamburger_forward.1} parent=11 // pred_check_branch
          %355 = sbr.rel (%p353) target = $region28
        $region27: #{hamburger_forward.1} parent=11 // pred_region
          _
        $region28: #{hamburger_forward.1} parent=11 // pred_fallthru
          _
        // Predicated region
        $region29: #{hamburger_forward.1} parent=11 // pred_check
          %p356 = pneg %p156
        $region30: #{hamburger_forward.1} parent=11 // pred_check_branch
          %358 = sbr.rel (%p356) target = $region32
        $region31: #{hamburger_forward.1} parent=11 // pred_region
          _
        $region32: #{hamburger_forward.1} parent=11 // pred_fallthru
          _
        // Predicated region
        $region33: #{hamburger_forward.1} parent=11 // pred_check
          %p359 = pneg %p177
        $region34: #{hamburger_forward.1} parent=11 // pred_check_branch
          %361 = sbr.rel (%p359) target = $region36
        $region35: #{hamburger_forward.1} parent=11 // pred_region
          _
        $region36: #{hamburger_forward.1} parent=11 // pred_fallthru
          _
        // Predicated region
        $region37: #{hamburger_forward.1} parent=11 // pred_check
          %p362 = pneg %p198
        $region38: #{hamburger_forward.1} parent=11 // pred_check_branch
          %364 = sbr.rel (%p362) target = $region40
        $region39: #{hamburger_forward.1} parent=11 // pred_region
          _
        $region40: #{hamburger_forward.1} parent=11 // pred_fallthru
          _
        // Predicated region
        $region41: #{hamburger_forward.1} parent=11 // pred_check
          %p365 = pneg %p219
        $region42: #{hamburger_forward.1} parent=11 // pred_check_branch
          %367 = sbr.rel (%p365) target = $region44
        $region43: #{hamburger_forward.1} parent=11 // pred_region
          _
        $region44: #{hamburger_forward.1} parent=11 // pred_fallthru
          _
        // Predicated region
        $region45: #{hamburger_forward.1} parent=11 // pred_check
          %p368 = pneg %p240
        $region46: #{hamburger_forward.1} parent=11 // pred_check_branch
          %370 = sbr.rel (%p368) target = $region48
        $region47: #{hamburger_forward.1} parent=11 // pred_region
          _
        $region48: #{hamburger_forward.1} parent=11 // pred_fallthru
          _
        // Predicated region
        $region49: #{hamburger_forward.1} parent=11 // pred_check
          %p371 = pneg %p261
        $region50: #{hamburger_forward.1} parent=11 // pred_check_branch
          %373 = sbr.rel (%p371) target = $region52
        $region51: #{hamburger_forward.1} parent=11 // pred_region
          _
        $region52: #{hamburger_forward.1} parent=11 // pred_fallthru
          _
        // Predicated region
        $region53: #{hamburger_forward.1} parent=11 // pred_check
          %p374 = pneg %p282
        $region54: #{hamburger_forward.1} parent=11 // pred_check_branch
          %376 = sbr.rel (%p374) target = $region56
        $region55: #{hamburger_forward.1} parent=11 // pred_region
          _
        $region56: #{hamburger_forward.1} parent=11 // pred_fallthru
          _
        // Predicated region
        $region57: #{hamburger_forward.1} parent=11 // pred_check
          %p377 = pneg %p303
        $region58: #{hamburger_forward.1} parent=11 // pred_check_branch
          %379 = sbr.rel (%p377) target = $region60
        $region59: #{hamburger_forward.1} parent=11 // pred_region
          _
        $region60: #{hamburger_forward.1} parent=11 // pred_fallthru
          _
      $region12: #{hamburger_forward.1} parent=5 // pred_fallthru
        _
      %p380 = scmp.lt.s32.totalorder %s25, 2
      // Predicated region
      $region61: #{hamburger_forward.1} parent=5 // pred_check
        %p381 = pneg %p380
      $region62: #{hamburger_forward.1} parent=5 // pred_check_branch
        %383 = sbr.rel (%p381) target = $region64
      $region63: #{hamburger_forward.1} parent=5 // pred_region
        // Predicated region
        $region65: #{hamburger_forward.1} parent=63 // pred_check
          %p384 = pneg %p45
        $region66: #{hamburger_forward.1} parent=63 // pred_check_branch
          %386 = sbr.rel (%p384) target = $region68
        $region67: #{hamburger_forward.1} parent=63 // pred_region
          %s387 = sand.u32 %s35, 1
          %s388 = scalar_lea.sflag [#allocation7], %s387
          %s389 = sand.u32 %s35, 1
          %s390 = smul.addr %s389, 512
          %s391 = scalar_lea.vmem [#allocation6], %s390
          %s393 = ssub.s32 8192, 8192
          %394 = vsyncadd %s388, %s393
          %s395 = smul.addr %s25, 64
          %s396 = smul.addr %s395, 128
          %s397 = scalar_lea.hbm %s0, %s396
          %s398 = sshll.u32 %s391, 4
          %s399 = int_to_ptr.vmem [resolvable:$true] %s398
          %404 = dma.hbm_to_vmem [thread:$0]  %s397, 8192, %s399, %s388, 128, 128, 8
        $region68: #{hamburger_forward.1} parent=63 // pred_fallthru
          _
      $region64: #{hamburger_forward.1} parent=5 // pred_fallthru
        _
      %p405 = scmp.le.s32.totalorder 1, %s25
      %p406 = scmp.lt.s32.totalorder %s25, 3
      %p407 = pnand %p405, %p406
      %p408 = pneg %p407
      // Predicated region
      $region69: #{hamburger_forward.1} parent=5 // pred_check
        _
      $region70: #{hamburger_forward.1} parent=5 // pred_check_branch
        %410 = sbr.rel (%p407) target = $region72
      $region71: #{hamburger_forward.1} parent=5 // pred_region
        %s411 = ssub.s32 %s25, 1
        %s412 = sand.u32 %s38, 1
        %s413 = scalar_lea.sflag [#allocation7], %s412
        %s414 = sand.u32 %s38, 1
        %s415 = smul.addr %s414, 512
        %s416 = scalar_lea.vmem [#allocation6], %s415
        // Predicated region
        $region73: #{hamburger_forward.1} parent=71 // pred_check
          %p417 = pneg %p51
        $region74: #{hamburger_forward.1} parent=71 // pred_check_branch
          %419 = sbr.rel (%p417) target = $region76
        $region75: #{hamburger_forward.1} parent=71 // pred_region
          %420 = dma.done %s413, 8192
        $region76: #{hamburger_forward.1} parent=71 // pred_fallthru
          _
        %s421 = sand.u32 %s38, 1
        %s422 = scalar_lea.sflag [#allocation7], %s421
        %s423 = sand.u32 %s38, 1
        %s424 = smul.addr %s423, 512
        %s425 = scalar_lea.vmem [#allocation6], %s424
        %p426 = pneg %p51
        %p427 = pneg %p48
        %p428 = pneg %p72
        %p429 = pneg %p69
        %p430 = pneg %p93
        %p431 = pneg %p90
        %p432 = pneg %p114
        %p433 = pneg %p111
        %p434 = pneg %p135
        %p435 = pneg %p132
        %p436 = pneg %p156
        %p437 = pneg %p153
        %p438 = pneg %p177
        %p439 = pneg %p174
        %p440 = pneg %p198
        %p441 = pneg %p195
        %p442 = pneg %p219
        %p443 = pneg %p216
        %p444 = pneg %p240
        %p445 = pneg %p237
        %p446 = pneg %p261
        %p447 = pneg %p258
        %p448 = pneg %p282
        %p449 = pneg %p279
        %p450 = pneg %p303
        %p451 = pneg %p300
        %p452 = pneg %p329
        %p453 = pneg %p326
        %s454 = sand.u32 %s316, 1
        %s455 = scalar_lea.sflag [#allocation8], %s454
        %s456 = sand.u32 %s316, 1
        %s457 = smul.addr %s456, 512
        %s458 = scalar_lea.vmem [#allocation9], %s457
        loop: start=0, step=1, limit=8
        $region77: #{hamburger_forward.1} parent=71 // loop_pre_header
          _
        $region78: #{hamburger_forward.1} parent=71 // loop_header
          %s460 = sphi 0, %s464
          %p461 = scmp.ge.s32.totalorder %s460, 8
          %v465 = vphi 0.0, %v584
          %v466 = vphi 0.0, %v585
          %v467 = vphi 0.0, %v586
          %v468 = vphi 0.0, %v587
          %v469 = vphi 0.0, %v588
          %v470 = vphi 0.0, %v589
          %v471 = vphi 0.0, %v590
          %v472 = vphi 0.0, %v591
        $region79: #{hamburger_forward.1} parent=71 // loop_header_branch
          %463 = sbr.rel (%p461) target = $region83
        $region80: #{hamburger_forward.1} parent=71 // loop_body
          %s473 = smul.u32 %s460, 64
          %s474 = scalar_lea.vmem %s416, %s473 [#allocation6]
          %v475 = vld [vmem:[%s474] sm:$0xff]
          %v476 = vld [vmem:[%s474 + $0x8] sm:$0xff]
          %v477 = vld [vmem:[%s474 + $0x10] sm:$0xff]
          %v478 = vld [vmem:[%s474 + $0x18] sm:$0xff]
          %v479 = vld [vmem:[%s474 + $0x20] sm:$0xff]
          %v480 = vld [vmem:[%s474 + $0x28] sm:$0xff]
          %v481 = vld [vmem:[%s474 + $0x30] sm:$0xff]
          %v482 = vld [vmem:[%s474 + $0x38] sm:$0xff]
          %vm483 = vcmask 261120
          %v484 = vsel %vm483, %v475, 0.0
          %v485 = vsel %vm483, %v476, 0.0
          %v486 = vadd.f32 %v484, %v485
          %v487 = vsel %vm483, %v477, 0.0
          %v488 = vadd.f32 %v486, %v487
          %v489 = vsel %vm483, %v478, 0.0
          %v490 = vadd.f32 %v488, %v489
          %v491 = vsel %vm483, %v479, 0.0
          %v492 = vadd.f32 %v490, %v491
          %v493 = vsel %vm483, %v480, 0.0
          %v494 = vadd.f32 %v492, %v493
          %v495 = vsel %vm483, %v481, 0.0
          %v496 = vadd.f32 %v494, %v495
          %v497 = vsel %vm483, %v482, 0.0
          %v498 = vadd.f32 %v496, %v497
          %v499 = vmul.f32 %v498, 0.125
          %s500 = smul.u32 %s460, 8
          %s501 = scalar_lea.vmem [#allocation2], %s500
          %502 = vst.msk [vmem:[%s501] sm:$0xff] %vm483, %v499
          %v503 = vrot.slane %v484, 4
          %v504 = vadd.f32 %v484, %v503
          %v505 = vrot.slane %v504, 2
          %v506 = vadd.f32 %v504, %v505
          %v507 = vrot.slane %v506, 1
          %v508 = vadd.f32 %v506, %v507
          %v509 = vrot.slane %v485, 4
          %v510 = vadd.f32 %v485, %v509
          %v511 = vrot.slane %v510, 2
          %v512 = vadd.f32 %v510, %v511
          %v513 = vrot.slane %v512, 1
          %v514 = vadd.f32 %v512, %v513
          %v515 = vrot.slane %v487, 4
          %v516 = vadd.f32 %v487, %v515
          %v517 = vrot.slane %v516, 2
          %v518 = vadd.f32 %v516, %v517
          %v519 = vrot.slane %v518, 1
          %v520 = vadd.f32 %v518, %v519
          %v521 = vrot.slane %v489, 4
          %v522 = vadd.f32 %v489, %v521
          %v523 = vrot.slane %v522, 2
          %v524 = vadd.f32 %v522, %v523
          %v525 = vrot.slane %v524, 1
          %v526 = vadd.f32 %v524, %v525
          %v527 = vrot.slane %v491, 4
          %v528 = vadd.f32 %v491, %v527
          %v529 = vrot.slane %v528, 2
          %v530 = vadd.f32 %v528, %v529
          %v531 = vrot.slane %v530, 1
          %v532 = vadd.f32 %v530, %v531
          %v533 = vrot.slane %v493, 4
          %v534 = vadd.f32 %v493, %v533
          %v535 = vrot.slane %v534, 2
          %v536 = vadd.f32 %v534, %v535
          %v537 = vrot.slane %v536, 1
          %v538 = vadd.f32 %v536, %v537
          %v539 = vrot.slane %v495, 4
          %v540 = vadd.f32 %v495, %v539
          %v541 = vrot.slane %v540, 2
          %v542 = vadd.f32 %v540, %v541
          %v543 = vrot.slane %v542, 1
          %v544 = vadd.f32 %v542, %v543
          %v545 = vrot.slane %v497, 4
          %v546 = vadd.f32 %v497, %v545
          %v547 = vrot.slane %v546, 2
          %v548 = vadd.f32 %v546, %v547
          %v549 = vrot.slane %v548, 1
          %v550 = vadd.f32 %v548, %v549
          %v551 = vmul.f32 %v508, 0.125
          %v552 = vmul.f32 %v514, 0.125
          %v553 = vmul.f32 %v520, 0.125
          %v554 = vmul.f32 %v526, 0.125
          %v555 = vmul.f32 %v532, 0.125
          %v556 = vmul.f32 %v538, 0.125
          %v557 = vmul.f32 %v544, 0.125
          %v558 = vmul.f32 %v550, 0.125
          %vm567 = vcmask 1041409
          %v568 = vsel %vm567, %v552, %v551
          %vm569 = vcmask 1042434
          %v570 = vsel %vm569, %v553, %v568
          %vm571 = vcmask 1043459
          %v572 = vsel %vm571, %v554, %v570
          %vm573 = vcmask 1044484
          %v574 = vsel %vm573, %v555, %v572
          %vm575 = vcmask 1045509
          %v576 = vsel %vm575, %v556, %v574
          %vm577 = vcmask 1046534
          %v578 = vsel %vm577, %v557, %v576
          %vm579 = vcmask 1047559
          %v580 = vsel %vm579, %v558, %v578
          %s582 = scalar_lea.vmem [#allocation3], %s500
          %583 = vst.msk [vmem:[%s582] sm:$0xff] %vm483, %v580
          %v584 = vadd.f32 %v465, %v475
          %v585 = vadd.f32 %v466, %v476
          %v586 = vadd.f32 %v467, %v477
          %v587 = vadd.f32 %v468, %v478
          %v588 = vadd.f32 %v469, %v479
          %v589 = vadd.f32 %v470, %v480
          %v590 = vadd.f32 %v471, %v481
          %v591 = vadd.f32 %v472, %v482
        $region81: #{hamburger_forward.1} parent=71 // loop_footer
          %s464 = sadd.s32 1, %s460
        $region82: #{hamburger_forward.1} parent=71 // loop_footer_branch
          %459 = sbr.rel target = $region78
        $region83: #{hamburger_forward.1} parent=71 // loop_exit
          _
        %v592 = vmul.f32 %v465, 0.125
        %v593 = vmul.f32 %v466, 0.125
        %v594 = vmul.f32 %v467, 0.125
        %v595 = vmul.f32 %v468, 0.125
        %v596 = vmul.f32 %v469, 0.125
        %v597 = vmul.f32 %v470, 0.125
        %v598 = vmul.f32 %v471, 0.125
        %v599 = vmul.f32 %v472, 0.125
        %v600 = vld [vmem:[#allocation2] sm:$0xff]
        %v601 = vld [vmem:[#allocation2 + $0x8] sm:$0xff]
        %v602 = vld [vmem:[#allocation2 + $0x10] sm:$0xff]
        %v603 = vld [vmem:[#allocation2 + $0x18] sm:$0xff]
        %v604 = vld [vmem:[#allocation2 + $0x20] sm:$0xff]
        %v605 = vld [vmem:[#allocation2 + $0x28] sm:$0xff]
        %v606 = vld [vmem:[#allocation2 + $0x30] sm:$0xff]
        %v607 = vld [vmem:[#allocation2 + $0x38] sm:$0xff]
        %v608 = vld [vmem:[#allocation3] sm:$0xff]
        %v609 = vld [vmem:[#allocation3 + $0x8] sm:$0xff]
        %v610 = vld [vmem:[#allocation3 + $0x10] sm:$0xff]
        %v611 = vld [vmem:[#allocation3 + $0x18] sm:$0xff]
        %v612 = vld [vmem:[#allocation3 + $0x20] sm:$0xff]
        %v613 = vld [vmem:[#allocation3 + $0x28] sm:$0xff]
        %v614 = vld [vmem:[#allocation3 + $0x30] sm:$0xff]
        %v615 = vld [vmem:[#allocation3 + $0x38] sm:$0xff]
        %v616 = vld [vmem:[%s1] sm:$0xff]
        %v617 = vld [vmem:[%s1 + $0x8] sm:$0xff]
        %v618 = vld [vmem:[%s1 + $0x10] sm:$0xff]
        %v619 = vld [vmem:[%s1 + $0x18] sm:$0xff]
        %v620 = vld [vmem:[%s2] sm:$0x1]
        %v622 = vlaneseq
        %v623 = vshrl.u32 %v622, 7
        %v624 = vsub.s32 0, %v623
        %v625 = vrot.slane %v620, %v624
        %vm627 = vcmask 261120
        %v629 = vsel %vm627, %v592, 0
        %v632 = vsel %vm627, %v593, 0
        %v635 = vsel %vm627, %v594, 0
        %v638 = vsel %vm627, %v595, 0
        %v641 = vsel %vm627, %v596, 0
        %v644 = vsel %vm627, %v597, 0
        %v647 = vsel %vm627, %v598, 0
        %v650 = vsel %vm627, %v599, 0
        %652 = vmatprep.subr.mxu0 0.0
        %653 = vmatpush1.msra.mxu0 0.0
        %654 = vmatprep.subr.mxu0 0.0
        %655 = vmatpush1.msra.mxu0 0.0
        %656 = vmatprep.subr.mxu0 0.0
        %657 = vmatpush1.msra.mxu0 0.0
        %658 = vmatprep.subr.mxu0 0.0
        %659 = vmatpush1.msra.mxu0 0.0
        %660 = vmatprep.subr.mxu0 0.0
        %661 = vmatpush1.msra.mxu0 0.0
        %662 = vmatprep.subr.mxu0 0.0
        %663 = vmatpush1.msra.mxu0 0.0
        %664 = vmatprep.subr.mxu0 0.0
        %665 = vmatpush1.msra.mxu0 0.0
        %666 = vmatprep.subr.mxu0 0.0
        %667 = vmatpush1.msra.mxu0 0.0
        %668 = vmatprep.subr.mxu0 0.0
        %669 = vmatpush1.msra.mxu0 0.0
        %670 = vmatprep.subr.mxu0 0.0
        %671 = vmatpush1.msra.mxu0 0.0
        %672 = vmatprep.subr.mxu0 0.0
        %673 = vmatpush1.msra.mxu0 0.0
        %674 = vmatprep.subr.mxu0 0.0
        %675 = vmatpush1.msra.mxu0 0.0
        %676 = vmatprep.subr.mxu0 0.0
        %677 = vmatpush1.msra.mxu0 %v619
        %678 = vmatprep.subr.mxu0 0.0
        %679 = vmatpush1.msra.mxu0 %v618
        %680 = vmatprep.subr.mxu0 0.0
        %681 = vmatpush1.msra.mxu0 %v617
        %682 = vmatprep.subr.mxu0 0.0
        %683 = vmatpush1.msra.mxu0 %v616
        %684 = vmatprep.subr.mxu0 0.0
        %685 = vmatpush2.msra.mxu0 0.0
        %686 = vmatprep.subr.mxu0 0.0
        %687 = vmatpush2.msra.mxu0 0.0
        %688 = vmatprep.subr.mxu0 0.0
        %689 = vmatpush2.msra.mxu0 0.0
        %690 = vmatprep.subr.mxu0 0.0
        %691 = vmatpush2.msra.mxu0 0.0
        %692 = vmatprep.subr.mxu0 0.0
        %693 = vmatpush2.msra.mxu0 0.0
        %694 = vmatprep.subr.mxu0 0.0
        %695 = vmatpush2.msra.mxu0 0.0
        %696 = vmatprep.subr.mxu0 0.0
        %697 = vmatpush2.msra.mxu0 0.0
        %698 = vmatprep.subr.mxu0 0.0
        %699 = vmatpush2.msra.mxu0 0.0
        %700 = vmatprep.subr.mxu0 0.0
        %701 = vmatpush2.msra.mxu0 0.0
        %702 = vmatprep.subr.mxu0 0.0
        %703 = vmatpush2.msra.mxu0 0.0
        %704 = vmatprep.subr.mxu0 0.0
        %705 = vmatpush2.msra.mxu0 0.0
        %706 = vmatprep.subr.mxu0 0.0
        %707 = vmatpush2.msra.mxu0 0.0
        %708 = vmatprep.subr.mxu0 0.0
        %709 = vmatpush2.msra.mxu0 0.0
        %710 = vmatprep.subr.mxu0 0.0
        %711 = vmatpush2.msra.mxu0 0.0
        %712 = vmatprep.subr.mxu0 0.0
        %713 = vmatpush2.msra.mxu0 0.0
        %714 = vmatprep.subr.mxu0 0.0
        %715 = vmatpush2.msra.mxu0 0.0
        %716 = vmatprep.mubr.f32.mxu0 0.0
        %717 = vmatmul.mubr.f32.gmra.mxu0 %v629
        %v718 = vpop.f32.mrf.mxu0
        %v719 = vadd.f32 %v625, %v718
        %v720 = vpop.f32.mrf.mxu0
        %721 = vmatprep.mubr.f32.mxu0 0.0
        %722 = vmatmul.mubr.f32.gmra.mxu0 %v632
        %v723 = vpop.f32.mrf.mxu0
        %v724 = vadd.f32 %v625, %v723
        %v725 = vpop.f32.mrf.mxu0
        %726 = vmatprep.mubr.f32.mxu0 0.0
        %727 = vmatmul.mubr.f32.gmra.mxu0 %v635
        %v728 = vpop.f32.mrf.mxu0
        %v729 = vadd.f32 %v625, %v728
        %v730 = vpop.f32.mrf.mxu0
        %731 = vmatprep.mubr.f32.mxu0 0.0
        %732 = vmatmul.mubr.f32.gmra.mxu0 %v638
        %v733 = vpop.f32.mrf.mxu0
        %v734 = vadd.f32 %v625, %v733
        %v735 = vpop.f32.mrf.mxu0
        %736 = vmatprep.mubr.f32.mxu0 0.0
        %737 = vmatmul.mubr.f32.gmra.mxu0 %v641
        %v738 = vpop.f32.mrf.mxu0
        %v739 = vadd.f32 %v625, %v738
        %v740 = vpop.f32.mrf.mxu0
        %741 = vmatprep.mubr.f32.mxu0 0.0
        %742 = vmatmul.mubr.f32.gmra.mxu0 %v644
        %v743 = vpop.f32.mrf.mxu0
        %v744 = vadd.f32 %v625, %v743
        %v745 = vpop.f32.mrf.mxu0
        %746 = vmatprep.mubr.f32.mxu0 0.0
        %747 = vmatmul.mubr.f32.gmra.mxu0 %v647
        %v748 = vpop.f32.mrf.mxu0
        %v749 = vadd.f32 %v625, %v748
        %v750 = vpop.f32.mrf.mxu0
        %751 = vmatprep.mubr.f32.mxu0 0.0
        %752 = vmatmul.mubr.f32.gmra.mxu0 %v650
        %v753 = vpop.f32.mrf.mxu0
        %v754 = vadd.f32 %v625, %v753
        %v755 = vpop.f32.mrf.mxu0
        %756 = vdwg.mxu0
        %v758 = vsel %vm627, %v600, 0
        %v761 = vsel %vm627, %v601, 0
        %v764 = vsel %vm627, %v602, 0
        %v767 = vsel %vm627, %v603, 0
        %v770 = vsel %vm627, %v604, 0
        %v773 = vsel %vm627, %v605, 0
        %v776 = vsel %vm627, %v606, 0
        %v779 = vsel %vm627, %v607, 0
        %781 = vmatprep.subr.mxu0 0.0
        %782 = vmatpush1.msra.mxu0 0.0
        %783 = vmatprep.subr.mxu0 0.0
        %784 = vmatpush1.msra.mxu0 0.0
        %785 = vmatprep.subr.mxu0 0.0
        %786 = vmatpush1.msra.mxu0 0.0
        %787 = vmatprep.subr.mxu0 0.0
        %788 = vmatpush1.msra.mxu0 0.0
        %789 = vmatprep.subr.mxu0 0.0
        %790 = vmatpush1.msra.mxu0 0.0
        %791 = vmatprep.subr.mxu0 0.0
        %792 = vmatpush1.msra.mxu0 0.0
        %793 = vmatprep.subr.mxu0 0.0
        %794 = vmatpush1.msra.mxu0 0.0
        %795 = vmatprep.subr.mxu0 0.0
        %796 = vmatpush1.msra.mxu0 0.0
        %797 = vmatprep.subr.mxu0 0.0
        %798 = vmatpush1.msra.mxu0 0.0
        %799 = vmatprep.subr.mxu0 0.0
        %800 = vmatpush1.msra.mxu0 0.0
        %801 = vmatprep.subr.mxu0 0.0
        %802 = vmatpush1.msra.mxu0 0.0
        %803 = vmatprep.subr.mxu0 0.0
        %804 = vmatpush1.msra.mxu0 0.0
        %805 = vmatprep.subr.mxu0 0.0
        %806 = vmatpush1.msra.mxu0 %v619
        %807 = vmatprep.subr.mxu0 0.0
        %808 = vmatpush1.msra.mxu0 %v618
        %809 = vmatprep.subr.mxu0 0.0
        %810 = vmatpush1.msra.mxu0 %v617
        %811 = vmatprep.subr.mxu0 0.0
        %812 = vmatpush1.msra.mxu0 %v616
        %813 = vmatprep.subr.mxu0 0.0
        %814 = vmatpush2.msra.mxu0 0.0
        %815 = vmatprep.subr.mxu0 0.0
        %816 = vmatpush2.msra.mxu0 0.0
        %817 = vmatprep.subr.mxu0 0.0
        %818 = vmatpush2.msra.mxu0 0.0
        %819 = vmatprep.subr.mxu0 0.0
        %820 = vmatpush2.msra.mxu0 0.0
        %821 = vmatprep.subr.mxu0 0.0
        %822 = vmatpush2.msra.mxu0 0.0
        %823 = vmatprep.subr.mxu0 0.0
        %824 = vmatpush2.msra.mxu0 0.0
        %825 = vmatprep.subr.mxu0 0.0
        %826 = vmatpush2.msra.mxu0 0.0
        %827 = vmatprep.subr.mxu0 0.0
        %828 = vmatpush2.msra.mxu0 0.0
        %829 = vmatprep.subr.mxu0 0.0
        %830 = vmatpush2.msra.mxu0 0.0
        %831 = vmatprep.subr.mxu0 0.0
        %832 = vmatpush2.msra.mxu0 0.0
        %833 = vmatprep.subr.mxu0 0.0
        %834 = vmatpush2.msra.mxu0 0.0
        %835 = vmatprep.subr.mxu0 0.0
        %836 = vmatpush2.msra.mxu0 0.0
        %837 = vmatprep.subr.mxu0 0.0
        %838 = vmatpush2.msra.mxu0 0.0
        %839 = vmatprep.subr.mxu0 0.0
        %840 = vmatpush2.msra.mxu0 0.0
        %841 = vmatprep.subr.mxu0 0.0
        %842 = vmatpush2.msra.mxu0 0.0
        %843 = vmatprep.subr.mxu0 0.0
        %844 = vmatpush2.msra.mxu0 0.0
        %845 = vmatprep.mubr.f32.mxu0 0.0
        %846 = vmatmul.mubr.f32.gmra.mxu0 %v758
        %v847 = vpop.f32.mrf.mxu0
        %v848 = vadd.f32 %v625, %v847
        %v849 = vpop.f32.mrf.mxu0
        %850 = vmatprep.mubr.f32.mxu0 0.0
        %851 = vmatmul.mubr.f32.gmra.mxu0 %v761
        %v852 = vpop.f32.mrf.mxu0
        %v853 = vadd.f32 %v625, %v852
        %v854 = vpop.f32.mrf.mxu0
        %855 = vmatprep.mubr.f32.mxu0 0.0
        %856 = vmatmul.mubr.f32.gmra.mxu0 %v764
        %v857 = vpop.f32.mrf.mxu0
        %v858 = vadd.f32 %v625, %v857
        %v859 = vpop.f32.mrf.mxu0
        %860 = vmatprep.mubr.f32.mxu0 0.0
        %861 = vmatmul.mubr.f32.gmra.mxu0 %v767
        %v862 = vpop.f32.mrf.mxu0
        %v863 = vadd.f32 %v625, %v862
        %v864 = vpop.f32.mrf.mxu0
        %865 = vmatprep.mubr.f32.mxu0 0.0
        %866 = vmatmul.mubr.f32.gmra.mxu0 %v770
        %v867 = vpop.f32.mrf.mxu0
        %v868 = vadd.f32 %v625, %v867
        %v869 = vpop.f32.mrf.mxu0
        %870 = vmatprep.mubr.f32.mxu0 0.0
        %871 = vmatmul.mubr.f32.gmra.mxu0 %v773
        %v872 = vpop.f32.mrf.mxu0
        %v873 = vadd.f32 %v625, %v872
        %v874 = vpop.f32.mrf.mxu0
        %875 = vmatprep.mubr.f32.mxu0 0.0
        %876 = vmatmul.mubr.f32.gmra.mxu0 %v776
        %v877 = vpop.f32.mrf.mxu0
        %v878 = vadd.f32 %v625, %v877
        %v879 = vpop.f32.mrf.mxu0
        %880 = vmatprep.mubr.f32.mxu0 0.0
        %881 = vmatmul.mubr.f32.gmra.mxu0 %v779
        %v882 = vpop.f32.mrf.mxu0
        %v883 = vadd.f32 %v625, %v882
        %v884 = vpop.f32.mrf.mxu0
        %885 = vdwg.mxu0
        %v887 = vsel %vm627, %v608, 0
        %v890 = vsel %vm627, %v609, 0
        %v893 = vsel %vm627, %v610, 0
        %v896 = vsel %vm627, %v611, 0
        %v899 = vsel %vm627, %v612, 0
        %v902 = vsel %vm627, %v613, 0
        %v905 = vsel %vm627, %v614, 0
        %v908 = vsel %vm627, %v615, 0
        %910 = vmatprep.subr.mxu0 0.0
        %911 = vmatpush1.msra.mxu0 0.0
        %912 = vmatprep.subr.mxu0 0.0
        %913 = vmatpush1.msra.mxu0 0.0
        %914 = vmatprep.subr.mxu0 0.0
        %915 = vmatpush1.msra.mxu0 0.0
        %916 = vmatprep.subr.mxu0 0.0
        %917 = vmatpush1.msra.mxu0 0.0
        %918 = vmatprep.subr.mxu0 0.0
        %919 = vmatpush1.msra.mxu0 0.0
        %920 = vmatprep.subr.mxu0 0.0
        %921 = vmatpush1.msra.mxu0 0.0
        %922 = vmatprep.subr.mxu0 0.0
        %923 = vmatpush1.msra.mxu0 0.0
        %924 = vmatprep.subr.mxu0 0.0
        %925 = vmatpush1.msra.mxu0 0.0
        %926 = vmatprep.subr.mxu0 0.0
        %927 = vmatpush1.msra.mxu0 0.0
        %928 = vmatprep.subr.mxu0 0.0
        %929 = vmatpush1.msra.mxu0 0.0
        %930 = vmatprep.subr.mxu0 0.0
        %931 = vmatpush1.msra.mxu0 0.0
        %932 = vmatprep.subr.mxu0 0.0
        %933 = vmatpush1.msra.mxu0 0.0
        %934 = vmatprep.subr.mxu0 0.0
        %935 = vmatpush1.msra.mxu0 %v619
        %936 = vmatprep.subr.mxu0 0.0
        %937 = vmatpush1.msra.mxu0 %v618
        %938 = vmatprep.subr.mxu0 0.0
        %939 = vmatpush1.msra.mxu0 %v617
        %940 = vmatprep.subr.mxu0 0.0
        %941 = vmatpush1.msra.mxu0 %v616
        %942 = vmatprep.subr.mxu0 0.0
        %943 = vmatpush2.msra.mxu0 0.0
        %944 = vmatprep.subr.mxu0 0.0
        %945 = vmatpush2.msra.mxu0 0.0
        %946 = vmatprep.subr.mxu0 0.0
        %947 = vmatpush2.msra.mxu0 0.0
        %948 = vmatprep.subr.mxu0 0.0
        %949 = vmatpush2.msra.mxu0 0.0
        %950 = vmatprep.subr.mxu0 0.0
        %951 = vmatpush2.msra.mxu0 0.0
        %952 = vmatprep.subr.mxu0 0.0
        %953 = vmatpush2.msra.mxu0 0.0
        %954 = vmatprep.subr.mxu0 0.0
        %955 = vmatpush2.msra.mxu0 0.0
        %956 = vmatprep.subr.mxu0 0.0
        %957 = vmatpush2.msra.mxu0 0.0
        %958 = vmatprep.subr.mxu0 0.0
        %959 = vmatpush2.msra.mxu0 0.0
        %960 = vmatprep.subr.mxu0 0.0
        %961 = vmatpush2.msra.mxu0 0.0
        %962 = vmatprep.subr.mxu0 0.0
        %963 = vmatpush2.msra.mxu0 0.0
        %964 = vmatprep.subr.mxu0 0.0
        %965 = vmatpush2.msra.mxu0 0.0
        %966 = vmatprep.subr.mxu0 0.0
        %967 = vmatpush2.msra.mxu0 0.0
        %968 = vmatprep.subr.mxu0 0.0
        %969 = vmatpush2.msra.mxu0 0.0
        %970 = vmatprep.subr.mxu0 0.0
        %971 = vmatpush2.msra.mxu0 0.0
        %972 = vmatprep.subr.mxu0 0.0
        %973 = vmatpush2.msra.mxu0 0.0
        %974 = vmatprep.mubr.f32.mxu0 0.0
        %975 = vmatmul.mubr.f32.gmra.mxu0 %v887
        %v976 = vpop.f32.mrf.mxu0
        %v977 = vadd.f32 %v625, %v976
        %v978 = vpop.f32.mrf.mxu0
        %979 = vmatprep.mubr.f32.mxu0 0.0
        %980 = vmatmul.mubr.f32.gmra.mxu0 %v890
        %v981 = vpop.f32.mrf.mxu0
        %v982 = vadd.f32 %v625, %v981
        %v983 = vpop.f32.mrf.mxu0
        %984 = vmatprep.mubr.f32.mxu0 0.0
        %985 = vmatmul.mubr.f32.gmra.mxu0 %v893
        %v986 = vpop.f32.mrf.mxu0
        %v987 = vadd.f32 %v625, %v986
        %v988 = vpop.f32.mrf.mxu0
        %989 = vmatprep.mubr.f32.mxu0 0.0
        %990 = vmatmul.mubr.f32.gmra.mxu0 %v896
        %v991 = vpop.f32.mrf.mxu0
        %v992 = vadd.f32 %v625, %v991
        %v993 = vpop.f32.mrf.mxu0
        %994 = vmatprep.mubr.f32.mxu0 0.0
        %995 = vmatmul.mubr.f32.gmra.mxu0 %v899
        %v996 = vpop.f32.mrf.mxu0
        %v997 = vadd.f32 %v625, %v996
        %v998 = vpop.f32.mrf.mxu0
        %999 = vmatprep.mubr.f32.mxu0 0.0
        %1000 = vmatmul.mubr.f32.gmra.mxu0 %v902
        %v1001 = vpop.f32.mrf.mxu0
        %v1002 = vadd.f32 %v625, %v1001
        %v1003 = vpop.f32.mrf.mxu0
        %1004 = vmatprep.mubr.f32.mxu0 0.0
        %1005 = vmatmul.mubr.f32.gmra.mxu0 %v905
        %v1006 = vpop.f32.mrf.mxu0
        %v1007 = vadd.f32 %v625, %v1006
        %v1008 = vpop.f32.mrf.mxu0
        %1009 = vmatprep.mubr.f32.mxu0 0.0
        %1010 = vmatmul.mubr.f32.gmra.mxu0 %v908
        %v1011 = vpop.f32.mrf.mxu0
        %v1012 = vadd.f32 %v625, %v1011
        %v1013 = vpop.f32.mrf.mxu0
        %1014 = vdwg.mxu0
        %vm1015 = vcmask 64512
        %v1016 = vsel %vm1015, %v719, 0.0
        %v1017 = vsel %vm1015, %v724, 0.0
        %v1018 = vadd.f32 %v1016, %v1017
        %v1019 = vsel %vm1015, %v729, 0.0
        %v1020 = vadd.f32 %v1018, %v1019
        %v1021 = vsel %vm1015, %v734, 0.0
        %v1022 = vadd.f32 %v1020, %v1021
        %v1023 = vsel %vm1015, %v739, 0.0
        %v1024 = vadd.f32 %v1022, %v1023
        %v1025 = vsel %vm1015, %v744, 0.0
        %v1026 = vadd.f32 %v1024, %v1025
        %v1027 = vsel %vm1015, %v749, 0.0
        %v1028 = vadd.f32 %v1026, %v1027
        %v1029 = vsel %vm1015, %v754, 0.0
        %v1030 = vadd.f32 %v1028, %v1029
        %v1031 = vrot.slane %v1030, 4
        %v1032 = vadd.f32 %v1030, %v1031
        %v1033 = vrot.slane %v1032, 2
        %v1034 = vadd.f32 %v1032, %v1033
        %v1035 = vrot.slane %v1034, 1
        %v1036 = vadd.f32 %v1034, %v1035
        %v1037 = vsel %vm1015, %v848, 0.0
        %v1038 = vsel %vm1015, %v853, 0.0
        %v1039 = vadd.f32 %v1037, %v1038
        %v1040 = vsel %vm1015, %v858, 0.0
        %v1041 = vadd.f32 %v1039, %v1040
        %v1042 = vsel %vm1015, %v863, 0.0
        %v1043 = vadd.f32 %v1041, %v1042
        %v1044 = vsel %vm1015, %v868, 0.0
        %v1045 = vadd.f32 %v1043, %v1044
        %v1046 = vsel %vm1015, %v873, 0.0
        %v1047 = vadd.f32 %v1045, %v1046
        %v1048 = vsel %vm1015, %v878, 0.0
        %v1049 = vadd.f32 %v1047, %v1048
        %v1050 = vsel %vm1015, %v883, 0.0
        %v1051 = vadd.f32 %v1049, %v1050
        %v1052 = vrot.slane %v1051, 4
        %v1053 = vadd.f32 %v1051, %v1052
        %v1054 = vrot.slane %v1053, 2
        %v1055 = vadd.f32 %v1053, %v1054
        %v1056 = vrot.slane %v1055, 1
        %v1057 = vadd.f32 %v1055, %v1056
        %v1058 = vadd.f32 %v1036, %v1057
        %v1059 = vsel %vm1015, %v977, 0.0
        %v1060 = vsel %vm1015, %v982, 0.0
        %v1061 = vadd.f32 %v1059, %v1060
        %v1062 = vsel %vm1015, %v987, 0.0
        %v1063 = vadd.f32 %v1061, %v1062
        %v1064 = vsel %vm1015, %v992, 0.0
        %v1065 = vadd.f32 %v1063, %v1064
        %v1066 = vsel %vm1015, %v997, 0.0
        %v1067 = vadd.f32 %v1065, %v1066
        %v1068 = vsel %vm1015, %v1002, 0.0
        %v1069 = vadd.f32 %v1067, %v1068
        %v1070 = vsel %vm1015, %v1007, 0.0
        %v1071 = vadd.f32 %v1069, %v1070
        %v1072 = vsel %vm1015, %v1012, 0.0
        %v1073 = vadd.f32 %v1071, %v1072
        %v1074 = vrot.slane %v1073, 4
        %v1075 = vadd.f32 %v1073, %v1074
        %v1076 = vrot.slane %v1075, 2
        %v1077 = vadd.f32 %v1075, %v1076
        %v1078 = vrot.slane %v1077, 1
        %v1079 = vadd.f32 %v1077, %v1078
        %v1080 = vadd.f32 %v1058, %v1079
        %v1081 = vmul.f32 %v719, %v719
        %v1082 = vmul.f32 %v724, %v724
        %v1083 = vmul.f32 %v729, %v729
        %v1084 = vmul.f32 %v734, %v734
        %v1085 = vmul.f32 %v739, %v739
        %v1086 = vmul.f32 %v744, %v744
        %v1087 = vmul.f32 %v749, %v749
        %v1088 = vmul.f32 %v754, %v754
        %v1089 = vsel %vm1015, %v1081, 0.0
        %v1090 = vsel %vm1015, %v1082, 0.0
        %v1091 = vadd.f32 %v1089, %v1090
        %v1092 = vsel %vm1015, %v1083, 0.0
        %v1093 = vadd.f32 %v1091, %v1092
        %v1094 = vsel %vm1015, %v1084, 0.0
        %v1095 = vadd.f32 %v1093, %v1094
        %v1096 = vsel %vm1015, %v1085, 0.0
        %v1097 = vadd.f32 %v1095, %v1096
        %v1098 = vsel %vm1015, %v1086, 0.0
        %v1099 = vadd.f32 %v1097, %v1098
        %v1100 = vsel %vm1015, %v1087, 0.0
        %v1101 = vadd.f32 %v1099, %v1100
        %v1102 = vsel %vm1015, %v1088, 0.0
        %v1103 = vadd.f32 %v1101, %v1102
        %v1104 = vrot.slane %v1103, 4
        %v1105 = vadd.f32 %v1103, %v1104
        %v1106 = vrot.slane %v1105, 2
        %v1107 = vadd.f32 %v1105, %v1106
        %v1108 = vrot.slane %v1107, 1
        %v1109 = vadd.f32 %v1107, %v1108
        %v1110 = vmul.f32 %v848, %v848
        %v1111 = vmul.f32 %v853, %v853
        %v1112 = vmul.f32 %v858, %v858
        %v1113 = vmul.f32 %v863, %v863
        %v1114 = vmul.f32 %v868, %v868
        %v1115 = vmul.f32 %v873, %v873
        %v1116 = vmul.f32 %v878, %v878
        %v1117 = vmul.f32 %v883, %v883
        %v1118 = vsel %vm1015, %v1110, 0.0
        %v1119 = vsel %vm1015, %v1111, 0.0
        %v1120 = vadd.f32 %v1118, %v1119
        %v1121 = vsel %vm1015, %v1112, 0.0
        %v1122 = vadd.f32 %v1120, %v1121
        %v1123 = vsel %vm1015, %v1113, 0.0
        %v1124 = vadd.f32 %v1122, %v1123
        %v1125 = vsel %vm1015, %v1114, 0.0
        %v1126 = vadd.f32 %v1124, %v1125
        %v1127 = vsel %vm1015, %v1115, 0.0
        %v1128 = vadd.f32 %v1126, %v1127
        %v1129 = vsel %vm1015, %v1116, 0.0
        %v1130 = vadd.f32 %v1128, %v1129
        %v1131 = vsel %vm1015, %v1117, 0.0
        %v1132 = vadd.f32 %v1130, %v1131
        %v1133 = vrot.slane %v1132, 4
        %v1134 = vadd.f32 %v1132, %v1133
        %v1135 = vrot.slane %v1134, 2
        %v1136 = vadd.f32 %v1134, %v1135
        %v1137 = vrot.slane %v1136, 1
        %v1138 = vadd.f32 %v1136, %v1137
        %v1139 = vadd.f32 %v1109, %v1138
        %v1140 = vmul.f32 %v977, %v977
        %v1141 = vmul.f32 %v982, %v982
        %v1142 = vmul.f32 %v987, %v987
        %v1143 = vmul.f32 %v992, %v992
        %v1144 = vmul.f32 %v997, %v997
        %v1145 = vmul.f32 %v1002, %v1002
        %v1146 = vmul.f32 %v1007, %v1007
        %v1147 = vmul.f32 %v1012, %v1012
        %v1148 = vsel %vm1015, %v1140, 0.0
        %v1149 = vsel %vm1015, %v1141, 0.0
        %v1150 = vadd.f32 %v1148, %v1149
        %v1151 = vsel %vm1015, %v1142, 0.0
        %v1152 = vadd.f32 %v1150, %v1151
        %v1153 = vsel %vm1015, %v1143, 0.0
        %v1154 = vadd.f32 %v1152, %v1153
        %v1155 = vsel %vm1015, %v1144, 0.0
        %v1156 = vadd.f32 %v1154, %v1155
        %v1157 = vsel %vm1015, %v1145, 0.0
        %v1158 = vadd.f32 %v1156, %v1157
        %v1159 = vsel %vm1015, %v1146, 0.0
        %v1160 = vadd.f32 %v1158, %v1159
        %v1161 = vsel %vm1015, %v1147, 0.0
        %v1162 = vadd.f32 %v1160, %v1161
        %v1163 = vrot.slane %v1162, 4
        %v1164 = vadd.f32 %v1162, %v1163
        %v1165 = vrot.slane %v1164, 2
        %v1166 = vadd.f32 %v1164, %v1165
        %v1167 = vrot.slane %v1166, 1
        %v1168 = vadd.f32 %v1166, %v1167
        %v1169 = vadd.f32 %v1139, %v1168
        %v1170 = vld [vmem:[%s3] sm:$0xff]
        %v1172 = vsel %vm1015, %v1080, 0
        %1174 = vmatprep.subr.mxu0 0.0
        %1175 = vmatpush1.msra.mxu0 0.0
        %1176 = vmatprep.subr.mxu0 0.0
        %1177 = vmatpush1.msra.mxu0 0.0
        %1178 = vmatprep.subr.mxu0 0.0
        %1179 = vmatpush1.msra.mxu0 0.0
        %1180 = vmatprep.subr.mxu0 0.0
        %1181 = vmatpush1.msra.mxu0 0.0
        %1182 = vmatprep.subr.mxu0 0.0
        %1183 = vmatpush1.msra.mxu0 0.0
        %1184 = vmatprep.subr.mxu0 0.0
        %1185 = vmatpush1.msra.mxu0 0.0
        %1186 = vmatprep.subr.mxu0 0.0
        %1187 = vmatpush1.msra.mxu0 0.0
        %1188 = vmatprep.subr.mxu0 0.0
        %1189 = vmatpush1.msra.mxu0 0.0
        %1190 = vmatprep.subr.mxu0 0.0
        %1191 = vmatpush1.msra.mxu0 0.0
        %1192 = vmatprep.subr.mxu0 0.0
        %1193 = vmatpush1.msra.mxu0 0.0
        %1194 = vmatprep.subr.mxu0 0.0
        %1195 = vmatpush1.msra.mxu0 0.0
        %1196 = vmatprep.subr.mxu0 0.0
        %1197 = vmatpush1.msra.mxu0 0.0
        %1198 = vmatprep.subr.mxu0 0.0
        %1199 = vmatpush1.msra.mxu0 0.0
        %1200 = vmatprep.subr.mxu0 0.0
        %1201 = vmatpush1.msra.mxu0 0.0
        %1202 = vmatprep.subr.mxu0 0.0
        %1203 = vmatpush1.msra.mxu0 0.0
        %1204 = vmatprep.subr.mxu0 0.0
        %1205 = vmatpush1.msra.mxu0 %v1170
        %1206 = vmatprep.subr.mxu0 0.0
        %1207 = vmatpush2.msra.mxu0 0.0
        %1208 = vmatprep.subr.mxu0 0.0
        %1209 = vmatpush2.msra.mxu0 0.0
        %1210 = vmatprep.subr.mxu0 0.0
        %1211 = vmatpush2.msra.mxu0 0.0
        %1212 = vmatprep.subr.mxu0 0.0
        %1213 = vmatpush2.msra.mxu0 0.0
        %1214 = vmatprep.subr.mxu0 0.0
        %1215 = vmatpush2.msra.mxu0 0.0
        %1216 = vmatprep.subr.mxu0 0.0
        %1217 = vmatpush2.msra.mxu0 0.0
        %1218 = vmatprep.subr.mxu0 0.0
        %1219 = vmatpush2.msra.mxu0 0.0
        %1220 = vmatprep.subr.mxu0 0.0
        %1221 = vmatpush2.msra.mxu0 0.0
        %1222 = vmatprep.subr.mxu0 0.0
        %1223 = vmatpush2.msra.mxu0 0.0
        %1224 = vmatprep.subr.mxu0 0.0
        %1225 = vmatpush2.msra.mxu0 0.0
        %1226 = vmatprep.subr.mxu0 0.0
        %1227 = vmatpush2.msra.mxu0 0.0
        %1228 = vmatprep.subr.mxu0 0.0
        %1229 = vmatpush2.msra.mxu0 0.0
        %1230 = vmatprep.subr.mxu0 0.0
        %1231 = vmatpush2.msra.mxu0 0.0
        %1232 = vmatprep.subr.mxu0 0.0
        %1233 = vmatpush2.msra.mxu0 0.0
        %1234 = vmatprep.subr.mxu0 0.0
        %1235 = vmatpush2.msra.mxu0 0.0
        %1236 = vmatprep.subr.mxu0 0.0
        %1237 = vmatpush2.msra.mxu0 0.0
        %1238 = vmatprep.mubr.f32.mxu0 0.0
        %1239 = vmatmul.mubr.f32.gmra.mxu0 %v1172
        %v1240 = vpop.f32.mrf.mxu0
        %v1241 = vadd.f32 0.0, %v1240
        %v1242 = vpop.f32.mrf.mxu0
        %1243 = vdwg.mxu0
        %v1244 = vmul.f32 %v1241, 0.0052083335
        %v1246 = vsel %vm1015, %v1169, 0
        %1248 = vmatprep.subr.mxu0 0.0
        %1249 = vmatpush1.msra.mxu0 0.0
        %1250 = vmatprep.subr.mxu0 0.0
        %1251 = vmatpush1.msra.mxu0 0.0
        %1252 = vmatprep.subr.mxu0 0.0
        %1253 = vmatpush1.msra.mxu0 0.0
        %1254 = vmatprep.subr.mxu0 0.0
        %1255 = vmatpush1.msra.mxu0 0.0
        %1256 = vmatprep.subr.mxu0 0.0
        %1257 = vmatpush1.msra.mxu0 0.0
        %1258 = vmatprep.subr.mxu0 0.0
        %1259 = vmatpush1.msra.mxu0 0.0
        %1260 = vmatprep.subr.mxu0 0.0
        %1261 = vmatpush1.msra.mxu0 0.0
        %1262 = vmatprep.subr.mxu0 0.0
        %1263 = vmatpush1.msra.mxu0 0.0
        %1264 = vmatprep.subr.mxu0 0.0
        %1265 = vmatpush1.msra.mxu0 0.0
        %1266 = vmatprep.subr.mxu0 0.0
        %1267 = vmatpush1.msra.mxu0 0.0
        %1268 = vmatprep.subr.mxu0 0.0
        %1269 = vmatpush1.msra.mxu0 0.0
        %1270 = vmatprep.subr.mxu0 0.0
        %1271 = vmatpush1.msra.mxu0 0.0
        %1272 = vmatprep.subr.mxu0 0.0
        %1273 = vmatpush1.msra.mxu0 0.0
        %1274 = vmatprep.subr.mxu0 0.0
        %1275 = vmatpush1.msra.mxu0 0.0
        %1276 = vmatprep.subr.mxu0 0.0
        %1277 = vmatpush1.msra.mxu0 0.0
        %1278 = vmatprep.subr.mxu0 0.0
        %1279 = vmatpush1.msra.mxu0 %v1170
        %1280 = vmatprep.subr.mxu0 0.0
        %1281 = vmatpush2.msra.mxu0 0.0
        %1282 = vmatprep.subr.mxu0 0.0
        %1283 = vmatpush2.msra.mxu0 0.0
        %1284 = vmatprep.subr.mxu0 0.0
        %1285 = vmatpush2.msra.mxu0 0.0
        %1286 = vmatprep.subr.mxu0 0.0
        %1287 = vmatpush2.msra.mxu0 0.0
        %1288 = vmatprep.subr.mxu0 0.0
        %1289 = vmatpush2.msra.mxu0 0.0
        %1290 = vmatprep.subr.mxu0 0.0
        %1291 = vmatpush2.msra.mxu0 0.0
        %1292 = vmatprep.subr.mxu0 0.0
        %1293 = vmatpush2.msra.mxu0 0.0
        %1294 = vmatprep.subr.mxu0 0.0
        %1295 = vmatpush2.msra.mxu0 0.0
        %1296 = vmatprep.subr.mxu0 0.0
        %1297 = vmatpush2.msra.mxu0 0.0
        %1298 = vmatprep.subr.mxu0 0.0
        %1299 = vmatpush2.msra.mxu0 0.0
        %1300 = vmatprep.subr.mxu0 0.0
        %1301 = vmatpush2.msra.mxu0 0.0
        %1302 = vmatprep.subr.mxu0 0.0
        %1303 = vmatpush2.msra.mxu0 0.0
        %1304 = vmatprep.subr.mxu0 0.0
        %1305 = vmatpush2.msra.mxu0 0.0
        %1306 = vmatprep.subr.mxu0 0.0
        %1307 = vmatpush2.msra.mxu0 0.0
        %1308 = vmatprep.subr.mxu0 0.0
        %1309 = vmatpush2.msra.mxu0 0.0
        %1310 = vmatprep.subr.mxu0 0.0
        %1311 = vmatpush2.msra.mxu0 0.0
        %1312 = vmatprep.mubr.f32.mxu0 0.0
        %1313 = vmatmul.mubr.f32.gmra.mxu0 %v1246
        %v1314 = vpop.f32.mrf.mxu0
        %v1315 = vadd.f32 0.0, %v1314
        %v1316 = vpop.f32.mrf.mxu0
        %1317 = vdwg.mxu0
        %v1318 = vmul.f32 %v1315, 0.0052083335
        %v1319 = vmul.f32 %v1244, %v1244
        %v1320 = vsub.f32 %v1318, %v1319
        %v1321 = vmax.f32 %v1320, 0.0
        %v1322 = vadd.f32 %v1321, 1e-05
        %v1323 = vrsqrt.pop %v1322
        %v1324 = vld [vmem:[%s4] sm:$0x1]
        %v1325 = vmul.f32 %v1323, %v1324
        %v1326 = vld [vmem:[%s5] sm:$0x1]
        %v1327 = vmul.f32 %v1244, %v1325
        %v1328 = vsub.f32 %v1326, %v1327
        %v1329 = vlaneseq
        %v1330 = vshrl.u32 %v1329, 7
        %v1331 = vsub.s32 0, %v1330
        %v1332 = vrot.slane %v1325, %v1331
        %v1333 = vmul.f32 %v719, %v1332
        %v1334 = vmul.f32 %v724, %v1332
        %v1335 = vmul.f32 %v729, %v1332
        %v1336 = vmul.f32 %v734, %v1332
        %v1337 = vmul.f32 %v739, %v1332
        %v1338 = vmul.f32 %v744, %v1332
        %v1339 = vmul.f32 %v749, %v1332
        %v1340 = vmul.f32 %v754, %v1332
        %v1342 = vlaneseq
        %v1343 = vshrl.u32 %v1342, 7
        %v1344 = vsub.s32 0, %v1343
        %v1345 = vrot.slane %v1328, %v1344
        %v1347 = vadd.f32 %v1333, %v1345
        %v1348 = vadd.f32 %v1334, %v1345
        %v1349 = vadd.f32 %v1335, %v1345
        %v1350 = vadd.f32 %v1336, %v1345
        %v1351 = vadd.f32 %v1337, %v1345
        %v1352 = vadd.f32 %v1338, %v1345
        %v1353 = vadd.f32 %v1339, %v1345
        %v1354 = vadd.f32 %v1340, %v1345
        %vm1355 = vcmp.ge.f32.partialorder %v1347, 0.0
        %vm1356 = vcmp.ge.f32.partialorder %v1348, 0.0
        %vm1357 = vcmp.ge.f32.partialorder %v1349, 0.0
        %vm1358 = vcmp.ge.f32.partialorder %v1350, 0.0
        %vm1359 = vcmp.ge.f32.partialorder %v1351, 0.0
        %vm1360 = vcmp.ge.f32.partialorder %v1352, 0.0
        %vm1361 = vcmp.ge.f32.partialorder %v1353, 0.0
        %vm1362 = vcmp.ge.f32.partialorder %v1354, 0.0
        %v1363 = vmul.f32 %v1347, 0.2
        %v1364 = vmul.f32 %v1348, 0.2
        %v1365 = vmul.f32 %v1349, 0.2
        %v1366 = vmul.f32 %v1350, 0.2
        %v1367 = vmul.f32 %v1351, 0.2
        %v1368 = vmul.f32 %v1352, 0.2
        %v1369 = vmul.f32 %v1353, 0.2
        %v1370 = vmul.f32 %v1354, 0.2
        %v1371 = vsel %vm1355, %v1347, %v1363
        %v1372 = vsel %vm1356, %v1348, %v1364
        %v1373 = vsel %vm1357, %v1349, %v1365
        %v1374 = vsel %vm1358, %v1350, %v1366
        %v1375 = vsel %vm1359, %v1351, %v1367
        %v1376 = vsel %vm1360, %v1352, %v1368
        %v1377 = vsel %vm1361, %v1353, %v1369
        %v1378 = vsel %vm1362, %v1354, %v1370
        %v1379 = vld [vmem:[%s6] sm:$0xff]
        %v1380 = vld [vmem:[%s7] sm:$0x1]
        %v1382 = vlaneseq
        %v1383 = vshrl.u32 %v1382, 7
        %v1384 = vsub.s32 0, %v1383
        %v1385 = vrot.slane %v1380, %v1384
        %v1388 = vsel %vm1015, %v1371, 0
        %v1391 = vsel %vm1015, %v1372, 0
        %v1394 = vsel %vm1015, %v1373, 0
        %v1397 = vsel %vm1015, %v1374, 0
        %v1400 = vsel %vm1015, %v1375, 0
        %v1403 = vsel %vm1015, %v1376, 0
        %v1406 = vsel %vm1015, %v1377, 0
        %v1409 = vsel %vm1015, %v1378, 0
        %1411 = vmatprep.subr.mxu0 0.0
        %1412 = vmatpush1.msra.mxu0 0.0
        %1413 = vmatprep.subr.mxu0 0.0
        %1414 = vmatpush1.msra.mxu0 0.0
        %1415 = vmatprep.subr.mxu0 0.0
        %1416 = vmatpush1.msra.mxu0 0.0
        %1417 = vmatprep.subr.mxu0 0.0
        %1418 = vmatpush1.msra.mxu0 0.0
        %1419 = vmatprep.subr.mxu0 0.0
        %1420 = vmatpush1.msra.mxu0 0.0
        %1421 = vmatprep.subr.mxu0 0.0
        %1422 = vmatpush1.msra.mxu0 0.0
        %1423 = vmatprep.subr.mxu0 0.0
        %1424 = vmatpush1.msra.mxu0 0.0
        %1425 = vmatprep.subr.mxu0 0.0
        %1426 = vmatpush1.msra.mxu0 0.0
        %1427 = vmatprep.subr.mxu0 0.0
        %1428 = vmatpush1.msra.mxu0 0.0
        %1429 = vmatprep.subr.mxu0 0.0
        %1430 = vmatpush1.msra.mxu0 0.0
        %1431 = vmatprep.subr.mxu0 0.0
        %1432 = vmatpush1.msra.mxu0 0.0
        %1433 = vmatprep.subr.mxu0 0.0
        %1434 = vmatpush1.msra.mxu0 0.0
        %1435 = vmatprep.subr.mxu0 0.0
        %1436 = vmatpush1.msra.mxu0 0.0
        %1437 = vmatprep.subr.mxu0 0.0
        %1438 = vmatpush1.msra.mxu0 0.0
        %1439 = vmatprep.subr.mxu0 0.0
        %1440 = vmatpush1.msra.mxu0 0.0
        %1441 = vmatprep.subr.mxu0 0.0
        %1442 = vmatpush1.msra.mxu0 %v1379
        %1443 = vmatprep.subr.mxu0 0.0
        %1444 = vmatpush2.msra.mxu0 0.0
        %1445 = vmatprep.subr.mxu0 0.0
        %1446 = vmatpush2.msra.mxu0 0.0
        %1447 = vmatprep.subr.mxu0 0.0
        %1448 = vmatpush2.msra.mxu0 0.0
        %1449 = vmatprep.subr.mxu0 0.0
        %1450 = vmatpush2.msra.mxu0 0.0
        %1451 = vmatprep.subr.mxu0 0.0
        %1452 = vmatpush2.msra.mxu0 0.0
        %1453 = vmatprep.subr.mxu0 0.0
        %1454 = vmatpush2.msra.mxu0 0.0
        %1455 = vmatprep.subr.mxu0 0.0
        %1456 = vmatpush2.msra.mxu0 0.0
        %1457 = vmatprep.subr.mxu0 0.0
        %1458 = vmatpush2.msra.mxu0 0.0
        %1459 = vmatprep.subr.mxu0 0.0
        %1460 = vmatpush2.msra.mxu0 0.0
        %1461 = vmatprep.subr.mxu0 0.0
        %1462 = vmatpush2.msra.mxu0 0.0
        %1463 = vmatprep.subr.mxu0 0.0
        %1464 = vmatpush2.msra.mxu0 0.0
        %1465 = vmatprep.subr.mxu0 0.0
        %1466 = vmatpush2.msra.mxu0 0.0
        %1467 = vmatprep.subr.mxu0 0.0
        %1468 = vmatpush2.msra.mxu0 0.0
        %1469 = vmatprep.subr.mxu0 0.0
        %1470 = vmatpush2.msra.mxu0 0.0
        %1471 = vmatprep.subr.mxu0 0.0
        %1472 = vmatpush2.msra.mxu0 0.0
        %1473 = vmatprep.subr.mxu0 0.0
        %1474 = vmatpush2.msra.mxu0 0.0
        %1475 = vmatprep.mubr.f32.mxu0 0.0
        %1476 = vmatmul.mubr.f32.gmra.mxu0 %v1388
        %v1477 = vpop.f32.mrf.mxu0
        %v1478 = vadd.f32 %v1385, %v1477
        %v1479 = vpop.f32.mrf.mxu0
        %1480 = vmatprep.mubr.f32.mxu0 0.0
        %1481 = vmatmul.mubr.f32.gmra.mxu0 %v1391
        %v1482 = vpop.f32.mrf.mxu0
        %v1483 = vadd.f32 %v1385, %v1482
        %v1484 = vpop.f32.mrf.mxu0
        %1485 = vmatprep.mubr.f32.mxu0 0.0
        %1486 = vmatmul.mubr.f32.gmra.mxu0 %v1394
        %v1487 = vpop.f32.mrf.mxu0
        %v1488 = vadd.f32 %v1385, %v1487
        %v1489 = vpop.f32.mrf.mxu0
        %1490 = vmatprep.mubr.f32.mxu0 0.0
        %1491 = vmatmul.mubr.f32.gmra.mxu0 %v1397
        %v1492 = vpop.f32.mrf.mxu0
        %v1493 = vadd.f32 %v1385, %v1492
        %v1494 = vpop.f32.mrf.mxu0
        %1495 = vmatprep.mubr.f32.mxu0 0.0
        %1496 = vmatmul.mubr.f32.gmra.mxu0 %v1400
        %v1497 = vpop.f32.mrf.mxu0
        %v1498 = vadd.f32 %v1385, %v1497
        %v1499 = vpop.f32.mrf.mxu0
        %1500 = vmatprep.mubr.f32.mxu0 0.0
        %1501 = vmatmul.mubr.f32.gmra.mxu0 %v1403
        %v1502 = vpop.f32.mrf.mxu0
        %v1503 = vadd.f32 %v1385, %v1502
        %v1504 = vpop.f32.mrf.mxu0
        %1505 = vmatprep.mubr.f32.mxu0 0.0
        %1506 = vmatmul.mubr.f32.gmra.mxu0 %v1406
        %v1507 = vpop.f32.mrf.mxu0
        %v1508 = vadd.f32 %v1385, %v1507
        %v1509 = vpop.f32.mrf.mxu0
        %1510 = vmatprep.mubr.f32.mxu0 0.0
        %1511 = vmatmul.mubr.f32.gmra.mxu0 %v1409
        %v1512 = vpop.f32.mrf.mxu0
        %v1513 = vadd.f32 %v1385, %v1512
        %v1514 = vpop.f32.mrf.mxu0
        %1515 = vdwg.mxu0
        %v1516 = vsub.f32 0.0, %v1478
        %v1517 = vsub.f32 0.0, %v1483
        %v1518 = vsub.f32 0.0, %v1488
        %v1519 = vsub.f32 0.0, %v1493
        %v1520 = vsub.f32 0.0, %v1498
        %v1521 = vsub.f32 0.0, %v1503
        %v1522 = vsub.f32 0.0, %v1508
        %v1523 = vsub.f32 0.0, %v1513
        %v1524 = vmul.f32 %v1516, 1.442695
        %v1525 = vpow.pop %v1524
        %v1526 = vmul.f32 %v1517, 1.442695
        %v1527 = vpow.pop %v1526
        %v1528 = vmul.f32 %v1518, 1.442695
        %v1529 = vpow.pop %v1528
        %v1530 = vmul.f32 %v1519, 1.442695
        %v1531 = vpow.pop %v1530
        %v1532 = vmul.f32 %v1520, 1.442695
        %v1533 = vpow.pop %v1532
        %v1534 = vmul.f32 %v1521, 1.442695
        %v1535 = vpow.pop %v1534
        %v1536 = vmul.f32 %v1522, 1.442695
        %v1537 = vpow.pop %v1536
        %v1538 = vmul.f32 %v1523, 1.442695
        %v1539 = vpow.pop %v1538
        %v1540 = vadd.f32 %v1525, 1.0
        %v1541 = vadd.f32 %v1527, 1.0
        %v1542 = vadd.f32 %v1529, 1.0
        %v1543 = vadd.f32 %v1531, 1.0
        %v1544 = vadd.f32 %v1533, 1.0
        %v1545 = vadd.f32 %v1535, 1.0
        %v1546 = vadd.f32 %v1537, 1.0
        %v1547 = vadd.f32 %v1539, 1.0
        %v1548 = vrcp.pop %v1540
        %v1549 = vmul.f32 1.0, %v1548
        %v1550 = vrcp.pop %v1541
        %v1551 = vmul.f32 1.0, %v1550
        %v1552 = vrcp.pop %v1542
        %v1553 = vmul.f32 1.0, %v1552
        %v1554 = vrcp.pop %v1543
        %v1555 = vmul.f32 1.0, %v1554
        %v1556 = vrcp.pop %v1544
        %v1557 = vmul.f32 1.0, %v1556
        %v1558 = vrcp.pop %v1545
        %v1559 = vmul.f32 1.0, %v1558
        %v1560 = vrcp.pop %v1546
        %v1561 = vmul.f32 1.0, %v1560
        %v1562 = vrcp.pop %v1547
        %v1563 = vmul.f32 1.0, %v1562
        %1564 = vst.msk [vmem:[#allocation4] sm:$0xff] %vm627, %v1549
        %1565 = vst.msk [vmem:[#allocation4 + $0x8] sm:$0xff] %vm627, %v1551
        %1566 = vst.msk [vmem:[#allocation4 + $0x10] sm:$0xff] %vm627, %v1553
        %1567 = vst.msk [vmem:[#allocation4 + $0x18] sm:$0xff] %vm627, %v1555
        %1568 = vst.msk [vmem:[#allocation4 + $0x20] sm:$0xff] %vm627, %v1557
        %1569 = vst.msk [vmem:[#allocation4 + $0x28] sm:$0xff] %vm627, %v1559
        %1570 = vst.msk [vmem:[#allocation4 + $0x30] sm:$0xff] %vm627, %v1561
        %1571 = vst.msk [vmem:[#allocation4 + $0x38] sm:$0xff] %vm627, %v1563
        %v1572 = vmul.f32 %v848, %v1332
        %v1573 = vmul.f32 %v853, %v1332
        %v1574 = vmul.f32 %v858, %v1332
        %v1575 = vmul.f32 %v863, %v1332
        %v1576 = vmul.f32 %v868, %v1332
        %v1577 = vmul.f32 %v873, %v1332
        %v1578 = vmul.f32 %v878, %v1332
        %v1579 = vmul.f32 %v883, %v1332
        %v1580 = vadd.f32 %v1572, %v1345
        %v1581 = vadd.f32 %v1573, %v1345
        %v1582 = vadd.f32 %v1574, %v1345
        %v1583 = vadd.f32 %v1575, %v1345
        %v1584 = vadd.f32 %v1576, %v1345
        %v1585 = vadd.f32 %v1577, %v1345
        %v1586 = vadd.f32 %v1578, %v1345
        %v1587 = vadd.f32 %v1579, %v1345
        %vm1588 = vcmp.ge.f32.partialorder %v1580, 0.0
        %vm1589 = vcmp.ge.f32.partialorder %v1581, 0.0
        %vm1590 = vcmp.ge.f32.partialorder %v1582, 0.0
        %vm1591 = vcmp.ge.f32.partialorder %v1583, 0.0
        %vm1592 = vcmp.ge.f32.partialorder %v1584, 0.0
        %vm1593 = vcmp.ge.f32.partialorder %v1585, 0.0
        %vm1594 = vcmp.ge.f32.partialorder %v1586, 0.0
        %vm1595 = vcmp.ge.f32.partialorder %v1587, 0.0
        %v1596 = vmul.f32 %v1580, 0.2
        %v1597 = vmul.f32 %v1581, 0.2
        %v1598 = vmul.f32 %v1582, 0.2
        %v1599 = vmul.f32 %v1583, 0.2
        %v1600 = vmul.f32 %v1584, 0.2
        %v1601 = vmul.f32 %v1585, 0.2
        %v1602 = vmul.f32 %v1586, 0.2
        %v1603 = vmul.f32 %v1587, 0.2
        %v1604 = vsel %vm1588, %v1580, %v1596
        %v1605 = vsel %vm1589, %v1581, %v1597
        %v1606 = vsel %vm1590, %v1582, %v1598
        %v1607 = vsel %vm1591, %v1583, %v1599
        %v1608 = vsel %vm1592, %v1584, %v1600
        %v1609 = vsel %vm1593, %v1585, %v1601
        %v1610 = vsel %vm1594, %v1586, %v1602
        %v1611 = vsel %vm1595, %v1587, %v1603
        %v1612 = vld [vmem:[%s8] sm:$0xff]
        %v1613 = vld [vmem:[%s9] sm:$0x1]
        %v1615 = vlaneseq
        %v1616 = vshrl.u32 %v1615, 7
        %v1617 = vsub.s32 0, %v1616
        %v1618 = vrot.slane %v1613, %v1617
        %v1621 = vsel %vm1015, %v1604, 0
        %v1624 = vsel %vm1015, %v1605, 0
        %v1627 = vsel %vm1015, %v1606, 0
        %v1630 = vsel %vm1015, %v1607, 0
        %v1633 = vsel %vm1015, %v1608, 0
        %v1636 = vsel %vm1015, %v1609, 0
        %v1639 = vsel %vm1015, %v1610, 0
        %v1642 = vsel %vm1015, %v1611, 0
        %1644 = vmatprep.subr.mxu0 0.0
        %1645 = vmatpush1.msra.mxu0 0.0
        %1646 = vmatprep.subr.mxu0 0.0
        %1647 = vmatpush1.msra.mxu0 0.0
        %1648 = vmatprep.subr.mxu0 0.0
        %1649 = vmatpush1.msra.mxu0 0.0
        %1650 = vmatprep.subr.mxu0 0.0
        %1651 = vmatpush1.msra.mxu0 0.0
        %1652 = vmatprep.subr.mxu0 0.0
        %1653 = vmatpush1.msra.mxu0 0.0
        %1654 = vmatprep.subr.mxu0 0.0
        %1655 = vmatpush1.msra.mxu0 0.0
        %1656 = vmatprep.subr.mxu0 0.0
        %1657 = vmatpush1.msra.mxu0 0.0
        %1658 = vmatprep.subr.mxu0 0.0
        %1659 = vmatpush1.msra.mxu0 0.0
        %1660 = vmatprep.subr.mxu0 0.0
        %1661 = vmatpush1.msra.mxu0 0.0
        %1662 = vmatprep.subr.mxu0 0.0
        %1663 = vmatpush1.msra.mxu0 0.0
        %1664 = vmatprep.subr.mxu0 0.0
        %1665 = vmatpush1.msra.mxu0 0.0
        %1666 = vmatprep.subr.mxu0 0.0
        %1667 = vmatpush1.msra.mxu0 0.0
        %1668 = vmatprep.subr.mxu0 0.0
        %1669 = vmatpush1.msra.mxu0 0.0
        %1670 = vmatprep.subr.mxu0 0.0
        %1671 = vmatpush1.msra.mxu0 0.0
        %1672 = vmatprep.subr.mxu0 0.0
        %1673 = vmatpush1.msra.mxu0 0.0
        %1674 = vmatprep.subr.mxu0 0.0
        %1675 = vmatpush1.msra.mxu0 %v1612
        %1676 = vmatprep.subr.mxu0 0.0
        %1677 = vmatpush2.msra.mxu0 0.0
        %1678 = vmatprep.subr.mxu0 0.0
        %1679 = vmatpush2.msra.mxu0 0.0
        %1680 = vmatprep.subr.mxu0 0.0
        %1681 = vmatpush2.msra.mxu0 0.0
        %1682 = vmatprep.subr.mxu0 0.0
        %1683 = vmatpush2.msra.mxu0 0.0
        %1684 = vmatprep.subr.mxu0 0.0
        %1685 = vmatpush2.msra.mxu0 0.0
        %1686 = vmatprep.subr.mxu0 0.0
        %1687 = vmatpush2.msra.mxu0 0.0
        %1688 = vmatprep.subr.mxu0 0.0
        %1689 = vmatpush2.msra.mxu0 0.0
        %1690 = vmatprep.subr.mxu0 0.0
        %1691 = vmatpush2.msra.mxu0 0.0
        %1692 = vmatprep.subr.mxu0 0.0
        %1693 = vmatpush2.msra.mxu0 0.0
        %1694 = vmatprep.subr.mxu0 0.0
        %1695 = vmatpush2.msra.mxu0 0.0
        %1696 = vmatprep.subr.mxu0 0.0
        %1697 = vmatpush2.msra.mxu0 0.0
        %1698 = vmatprep.subr.mxu0 0.0
        %1699 = vmatpush2.msra.mxu0 0.0
        %1700 = vmatprep.subr.mxu0 0.0
        %1701 = vmatpush2.msra.mxu0 0.0
        %1702 = vmatprep.subr.mxu0 0.0
        %1703 = vmatpush2.msra.mxu0 0.0
        %1704 = vmatprep.subr.mxu0 0.0
        %1705 = vmatpush2.msra.mxu0 0.0
        %1706 = vmatprep.subr.mxu0 0.0
        %1707 = vmatpush2.msra.mxu0 0.0
        %1708 = vmatprep.mubr.f32.mxu0 0.0
        %1709 = vmatmul.mubr.f32.gmra.mxu0 %v1621
        %v1710 = vpop.f32.mrf.mxu0
        %v1711 = vadd.f32 %v1618, %v1710
        %v1712 = vpop.f32.mrf.mxu0
        %1713 = vmatprep.mubr.f32.mxu0 0.0
        %1714 = vmatmul.mubr.f32.gmra.mxu0 %v1624
        %v1715 = vpop.f32.mrf.mxu0
        %v1716 = vadd.f32 %v1618, %v1715
        %v1717 = vpop.f32.mrf.mxu0
        %1718 = vmatprep.mubr.f32.mxu0 0.0
        %1719 = vmatmul.mubr.f32.gmra.mxu0 %v1627
        %v1720 = vpop.f32.mrf.mxu0
        %v1721 = vadd.f32 %v1618, %v1720
        %v1722 = vpop.f32.mrf.mxu0
        %1723 = vmatprep.mubr.f32.mxu0 0.0
        %1724 = vmatmul.mubr.f32.gmra.mxu0 %v1630
        %v1725 = vpop.f32.mrf.mxu0
        %v1726 = vadd.f32 %v1618, %v1725
        %v1727 = vpop.f32.mrf.mxu0
        %1728 = vmatprep.mubr.f32.mxu0 0.0
        %1729 = vmatmul.mubr.f32.gmra.mxu0 %v1633
        %v1730 = vpop.f32.mrf.mxu0
        %v1731 = vadd.f32 %v1618, %v1730
        %v1732 = vpop.f32.mrf.mxu0
        %1733 = vmatprep.mubr.f32.mxu0 0.0
        %1734 = vmatmul.mubr.f32.gmra.mxu0 %v1636
        %v1735 = vpop.f32.mrf.mxu0
        %v1736 = vadd.f32 %v1618, %v1735
        %v1737 = vpop.f32.mrf.mxu0
        %1738 = vmatprep.mubr.f32.mxu0 0.0
        %1739 = vmatmul.mubr.f32.gmra.mxu0 %v1639
        %v1740 = vpop.f32.mrf.mxu0
        %v1741 = vadd.f32 %v1618, %v1740
        %v1742 = vpop.f32.mrf.mxu0
        %1743 = vmatprep.mubr.f32.mxu0 0.0
        %1744 = vmatmul.mubr.f32.gmra.mxu0 %v1642
        %v1745 = vpop.f32.mrf.mxu0
        %v1746 = vadd.f32 %v1618, %v1745
        %v1747 = vpop.f32.mrf.mxu0
        %1748 = vdwg.mxu0
        %v1749 = vsub.f32 0.0, %v1711
        %v1750 = vsub.f32 0.0, %v1716
        %v1751 = vsub.f32 0.0, %v1721
        %v1752 = vsub.f32 0.0, %v1726
        %v1753 = vsub.f32 0.0, %v1731
        %v1754 = vsub.f32 0.0, %v1736
        %v1755 = vsub.f32 0.0, %v1741
        %v1756 = vsub.f32 0.0, %v1746
        %v1757 = vmul.f32 %v1749, 1.442695
        %v1758 = vpow.pop %v1757
        %v1759 = vmul.f32 %v1750, 1.442695
        %v1760 = vpow.pop %v1759
        %v1761 = vmul.f32 %v1751, 1.442695
        %v1762 = vpow.pop %v1761
        %v1763 = vmul.f32 %v1752, 1.442695
        %v1764 = vpow.pop %v1763
        %v1765 = vmul.f32 %v1753, 1.442695
        %v1766 = vpow.pop %v1765
        %v1767 = vmul.f32 %v1754, 1.442695
        %v1768 = vpow.pop %v1767
        %v1769 = vmul.f32 %v1755, 1.442695
        %v1770 = vpow.pop %v1769
        %v1771 = vmul.f32 %v1756, 1.442695
        %v1772 = vpow.pop %v1771
        %v1773 = vadd.f32 %v1758, 1.0
        %v1774 = vadd.f32 %v1760, 1.0
        %v1775 = vadd.f32 %v1762, 1.0
        %v1776 = vadd.f32 %v1764, 1.0
        %v1777 = vadd.f32 %v1766, 1.0
        %v1778 = vadd.f32 %v1768, 1.0
        %v1779 = vadd.f32 %v1770, 1.0
        %v1780 = vadd.f32 %v1772, 1.0
        %v1781 = vrcp.pop %v1773
        %v1782 = vmul.f32 1.0, %v1781
        %v1783 = vrcp.pop %v1774
        %v1784 = vmul.f32 1.0, %v1783
        %v1785 = vrcp.pop %v1775
        %v1786 = vmul.f32 1.0, %v1785
        %v1787 = vrcp.pop %v1776
        %v1788 = vmul.f32 1.0, %v1787
        %v1789 = vrcp.pop %v1777
        %v1790 = vmul.f32 1.0, %v1789
        %v1791 = vrcp.pop %v1778
        %v1792 = vmul.f32 1.0, %v1791
        %v1793 = vrcp.pop %v1779
        %v1794 = vmul.f32 1.0, %v1793
        %v1795 = vrcp.pop %v1780
        %v1796 = vmul.f32 1.0, %v1795
        %v1797 = vmul.f32 %v977, %v1332
        %v1798 = vmul.f32 %v982, %v1332
        %v1799 = vmul.f32 %v987, %v1332
        %v1800 = vmul.f32 %v992, %v1332
        %v1801 = vmul.f32 %v997, %v1332
        %v1802 = vmul.f32 %v1002, %v1332
        %v1803 = vmul.f32 %v1007, %v1332
        %v1804 = vmul.f32 %v1012, %v1332
        %v1805 = vadd.f32 %v1797, %v1345
        %v1806 = vadd.f32 %v1798, %v1345
        %v1807 = vadd.f32 %v1799, %v1345
        %v1808 = vadd.f32 %v1800, %v1345
        %v1809 = vadd.f32 %v1801, %v1345
        %v1810 = vadd.f32 %v1802, %v1345
        %v1811 = vadd.f32 %v1803, %v1345
        %v1812 = vadd.f32 %v1804, %v1345
        %vm1813 = vcmp.ge.f32.partialorder %v1805, 0.0
        %vm1814 = vcmp.ge.f32.partialorder %v1806, 0.0
        %vm1815 = vcmp.ge.f32.partialorder %v1807, 0.0
        %vm1816 = vcmp.ge.f32.partialorder %v1808, 0.0
        %vm1817 = vcmp.ge.f32.partialorder %v1809, 0.0
        %vm1818 = vcmp.ge.f32.partialorder %v1810, 0.0
        %vm1819 = vcmp.ge.f32.partialorder %v1811, 0.0
        %vm1820 = vcmp.ge.f32.partialorder %v1812, 0.0
        %v1821 = vmul.f32 %v1805, 0.2
        %v1822 = vmul.f32 %v1806, 0.2
        %v1823 = vmul.f32 %v1807, 0.2
        %v1824 = vmul.f32 %v1808, 0.2
        %v1825 = vmul.f32 %v1809, 0.2
        %v1826 = vmul.f32 %v1810, 0.2
        %v1827 = vmul.f32 %v1811, 0.2
        %v1828 = vmul.f32 %v1812, 0.2
        %v1829 = vsel %vm1813, %v1805, %v1821
        %v1830 = vsel %vm1814, %v1806, %v1822
        %v1831 = vsel %vm1815, %v1807, %v1823
        %v1832 = vsel %vm1816, %v1808, %v1824
        %v1833 = vsel %vm1817, %v1809, %v1825
        %v1834 = vsel %vm1818, %v1810, %v1826
        %v1835 = vsel %vm1819, %v1811, %v1827
        %v1836 = vsel %vm1820, %v1812, %v1828
        %v1837 = vld [vmem:[%s10] sm:$0xff]
        %v1838 = vld [vmem:[%s11] sm:$0x1]
        %v1840 = vlaneseq
        %v1841 = vshrl.u32 %v1840, 7
        %v1842 = vsub.s32 0, %v1841
        %v1843 = vrot.slane %v1838, %v1842
        %v1846 = vsel %vm1015, %v1829, 0
        %v1849 = vsel %vm1015, %v1830, 0
        %v1852 = vsel %vm1015, %v1831, 0
        %v1855 = vsel %vm1015, %v1832, 0
        %v1858 = vsel %vm1015, %v1833, 0
        %v1861 = vsel %vm1015, %v1834, 0
        %v1864 = vsel %vm1015, %v1835, 0
        %v1867 = vsel %vm1015, %v1836, 0
        %1869 = vmatprep.subr.mxu0 0.0
        %1870 = vmatpush1.msra.mxu0 0.0
        %1871 = vmatprep.subr.mxu0 0.0
        %1872 = vmatpush1.msra.mxu0 0.0
        %1873 = vmatprep.subr.mxu0 0.0
        %1874 = vmatpush1.msra.mxu0 0.0
        %1875 = vmatprep.subr.mxu0 0.0
        %1876 = vmatpush1.msra.mxu0 0.0
        %1877 = vmatprep.subr.mxu0 0.0
        %1878 = vmatpush1.msra.mxu0 0.0
        %1879 = vmatprep.subr.mxu0 0.0
        %1880 = vmatpush1.msra.mxu0 0.0
        %1881 = vmatprep.subr.mxu0 0.0
        %1882 = vmatpush1.msra.mxu0 0.0
        %1883 = vmatprep.subr.mxu0 0.0
        %1884 = vmatpush1.msra.mxu0 0.0
        %1885 = vmatprep.subr.mxu0 0.0
        %1886 = vmatpush1.msra.mxu0 0.0
        %1887 = vmatprep.subr.mxu0 0.0
        %1888 = vmatpush1.msra.mxu0 0.0
        %1889 = vmatprep.subr.mxu0 0.0
        %1890 = vmatpush1.msra.mxu0 0.0
        %1891 = vmatprep.subr.mxu0 0.0
        %1892 = vmatpush1.msra.mxu0 0.0
        %1893 = vmatprep.subr.mxu0 0.0
        %1894 = vmatpush1.msra.mxu0 0.0
        %1895 = vmatprep.subr.mxu0 0.0
        %1896 = vmatpush1.msra.mxu0 0.0
        %1897 = vmatprep.subr.mxu0 0.0
        %1898 = vmatpush1.msra.mxu0 0.0
        %1899 = vmatprep.subr.mxu0 0.0
        %1900 = vmatpush1.msra.mxu0 %v1837
        %1901 = vmatprep.subr.mxu0 0.0
        %1902 = vmatpush2.msra.mxu0 0.0
        %1903 = vmatprep.subr.mxu0 0.0
        %1904 = vmatpush2.msra.mxu0 0.0
        %1905 = vmatprep.subr.mxu0 0.0
        %1906 = vmatpush2.msra.mxu0 0.0
        %1907 = vmatprep.subr.mxu0 0.0
        %1908 = vmatpush2.msra.mxu0 0.0
        %1909 = vmatprep.subr.mxu0 0.0
        %1910 = vmatpush2.msra.mxu0 0.0
        %1911 = vmatprep.subr.mxu0 0.0
        %1912 = vmatpush2.msra.mxu0 0.0
        %1913 = vmatprep.subr.mxu0 0.0
        %1914 = vmatpush2.msra.mxu0 0.0
        %1915 = vmatprep.subr.mxu0 0.0
        %1916 = vmatpush2.msra.mxu0 0.0
        %1917 = vmatprep.subr.mxu0 0.0
        %1918 = vmatpush2.msra.mxu0 0.0
        %1919 = vmatprep.subr.mxu0 0.0
        %1920 = vmatpush2.msra.mxu0 0.0
        %1921 = vmatprep.subr.mxu0 0.0
        %1922 = vmatpush2.msra.mxu0 0.0
        %1923 = vmatprep.subr.mxu0 0.0
        %1924 = vmatpush2.msra.mxu0 0.0
        %1925 = vmatprep.subr.mxu0 0.0
        %1926 = vmatpush2.msra.mxu0 0.0
        %1927 = vmatprep.subr.mxu0 0.0
        %1928 = vmatpush2.msra.mxu0 0.0
        %1929 = vmatprep.subr.mxu0 0.0
        %1930 = vmatpush2.msra.mxu0 0.0
        %1931 = vmatprep.subr.mxu0 0.0
        %1932 = vmatpush2.msra.mxu0 0.0
        %1933 = vmatprep.mubr.f32.mxu0 0.0
        %1934 = vmatmul.mubr.f32.gmra.mxu0 %v1846
        %v1935 = vpop.f32.mrf.mxu0
        %v1936 = vadd.f32 %v1843, %v1935
        %v1937 = vpop.f32.mrf.mxu0
        %1938 = vmatprep.mubr.f32.mxu0 0.0
        %1939 = vmatmul.mubr.f32.gmra.mxu0 %v1849
        %v1940 = vpop.f32.mrf.mxu0
        %v1941 = vadd.f32 %v1843, %v1940
        %v1942 = vpop.f32.mrf.mxu0
        %1943 = vmatprep.mubr.f32.mxu0 0.0
        %1944 = vmatmul.mubr.f32.gmra.mxu0 %v1852
        %v1945 = vpop.f32.mrf.mxu0
        %v1946 = vadd.f32 %v1843, %v1945
        %v1947 = vpop.f32.mrf.mxu0
        %1948 = vmatprep.mubr.f32.mxu0 0.0
        %1949 = vmatmul.mubr.f32.gmra.mxu0 %v1855
        %v1950 = vpop.f32.mrf.mxu0
        %v1951 = vadd.f32 %v1843, %v1950
        %v1952 = vpop.f32.mrf.mxu0
        %1953 = vmatprep.mubr.f32.mxu0 0.0
        %1954 = vmatmul.mubr.f32.gmra.mxu0 %v1858
        %v1955 = vpop.f32.mrf.mxu0
        %v1956 = vadd.f32 %v1843, %v1955
        %v1957 = vpop.f32.mrf.mxu0
        %1958 = vmatprep.mubr.f32.mxu0 0.0
        %1959 = vmatmul.mubr.f32.gmra.mxu0 %v1861
        %v1960 = vpop.f32.mrf.mxu0
        %v1961 = vadd.f32 %v1843, %v1960
        %v1962 = vpop.f32.mrf.mxu0
        %1963 = vmatprep.mubr.f32.mxu0 0.0
        %1964 = vmatmul.mubr.f32.gmra.mxu0 %v1864
        %v1965 = vpop.f32.mrf.mxu0
        %v1966 = vadd.f32 %v1843, %v1965
        %v1967 = vpop.f32.mrf.mxu0
        %1968 = vmatprep.mubr.f32.mxu0 0.0
        %1969 = vmatmul.mubr.f32.gmra.mxu0 %v1867
        %v1970 = vpop.f32.mrf.mxu0
        %v1971 = vadd.f32 %v1843, %v1970
        %v1972 = vpop.f32.mrf.mxu0
        %1973 = vdwg.mxu0
        %v1974 = vsub.f32 0.0, %v1936
        %v1975 = vsub.f32 0.0, %v1941
        %v1976 = vsub.f32 0.0, %v1946
        %v1977 = vsub.f32 0.0, %v1951
        %v1978 = vsub.f32 0.0, %v1956
        %v1979 = vsub.f32 0.0, %v1961
        %v1980 = vsub.f32 0.0, %v1966
        %v1981 = vsub.f32 0.0, %v1971
        %v1982 = vmul.f32 %v1974, 1.442695
        %v1983 = vpow.pop %v1982
        %v1984 = vmul.f32 %v1975, 1.442695
        %v1985 = vpow.pop %v1984
        %v1986 = vmul.f32 %v1976, 1.442695
        %v1987 = vpow.pop %v1986
        %v1988 = vmul.f32 %v1977, 1.442695
        %v1989 = vpow.pop %v1988
        %v1990 = vmul.f32 %v1978, 1.442695
        %v1991 = vpow.pop %v1990
        %v1992 = vmul.f32 %v1979, 1.442695
        %v1993 = vpow.pop %v1992
        %v1994 = vmul.f32 %v1980, 1.442695
        %v1995 = vpow.pop %v1994
        %v1996 = vmul.f32 %v1981, 1.442695
        %v1997 = vpow.pop %v1996
        %v1998 = vadd.f32 %v1983, 1.0
        %v1999 = vadd.f32 %v1985, 1.0
        %v2000 = vadd.f32 %v1987, 1.0
        %v2001 = vadd.f32 %v1989, 1.0
        %v2002 = vadd.f32 %v1991, 1.0
        %v2003 = vadd.f32 %v1993, 1.0
        %v2004 = vadd.f32 %v1995, 1.0
        %v2005 = vadd.f32 %v1997, 1.0
        %v2006 = vrcp.pop %v1998
        %v2007 = vmul.f32 1.0, %v2006
        %v2008 = vrcp.pop %v1999
        %v2009 = vmul.f32 1.0, %v2008
        %v2010 = vrcp.pop %v2000
        %v2011 = vmul.f32 1.0, %v2010
        %v2012 = vrcp.pop %v2001
        %v2013 = vmul.f32 1.0, %v2012
        %v2014 = vrcp.pop %v2002
        %v2015 = vmul.f32 1.0, %v2014
        %v2016 = vrcp.pop %v2003
        %v2017 = vmul.f32 1.0, %v2016
        %v2018 = vrcp.pop %v2004
        %v2019 = vmul.f32 1.0, %v2018
        %v2020 = vrcp.pop %v2005
        %v2021 = vmul.f32 1.0, %v2020
        %2022 = vst.msk [vmem:[#allocation5] sm:$0xff] %vm627, %v2007
        %2023 = vst.msk [vmem:[#allocation5 + $0x8] sm:$0xff] %vm627, %v2009
        %2024 = vst.msk [vmem:[#allocation5 + $0x10] sm:$0xff] %vm627, %v2011
        %2025 = vst.msk [vmem:[#allocation5 + $0x18] sm:$0xff] %vm627, %v2013
        %2026 = vst.msk [vmem:[#allocation5 + $0x20] sm:$0xff] %vm627, %v2015
        %2027 = vst.msk [vmem:[#allocation5 + $0x28] sm:$0xff] %vm627, %v2017
        %2028 = vst.msk [vmem:[#allocation5 + $0x30] sm:$0xff] %vm627, %v2019
        %2029 = vst.msk [vmem:[#allocation5 + $0x38] sm:$0xff] %vm627, %v2021
        %v2030 = vld [vmem:[%s12] sm:$0xff]
        %v2031 = vld [vmem:[%s12 + $0x8] sm:$0xff]
        %v2032 = vld [vmem:[%s12 + $0x10] sm:$0xff]
        %v2033 = vld [vmem:[%s12 + $0x18] sm:$0xff]
        %v2034 = vld [vmem:[%s12 + $0x20] sm:$0xff]
        %v2035 = vld [vmem:[%s12 + $0x28] sm:$0xff]
        %v2036 = vld [vmem:[%s12 + $0x30] sm:$0xff]
        %v2037 = vld [vmem:[%s12 + $0x38] sm:$0xff]
        loop: start=0, step=1, limit=8
        $region84: #{hamburger_forward.1} parent=71 // loop_pre_header
          _
        $region85: #{hamburger_forward.1} parent=71 // loop_header
          %s2039 = sphi 0, %s2043
          %p2040 = scmp.ge.s32.totalorder %s2039, 8
        $region86: #{hamburger_forward.1} parent=71 // loop_header_branch
          %2042 = sbr.rel (%p2040) target = $region90
        $region87: #{hamburger_forward.1} parent=71 // loop_body
          %s2044 = smul.u32 %s2039, 64
          %s2045 = scalar_lea.vmem %s416, %s2044 [#allocation6]
          %v2046 = vld [vmem:[%s2045] sm:$0xff]
          %v2047 = vld [vmem:[%s2045 + $0x8] sm:$0xff]
          %v2048 = vld [vmem:[%s2045 + $0x10] sm:$0xff]
          %v2049 = vld [vmem:[%s2045 + $0x18] sm:$0xff]
          %v2050 = vld [vmem:[%s2045 + $0x20] sm:$0xff]
          %v2051 = vld [vmem:[%s2045 + $0x28] sm:$0xff]
          %v2052 = vld [vmem:[%s2045 + $0x30] sm:$0xff]
          %v2053 = vld [vmem:[%s2045 + $0x38] sm:$0xff]
          %s2054 = smul.u32 %s2039, 8
          %s2055 = scalar_lea.vmem [#allocation4], %s2054
          %v2056 = vld [vmem:[%s2055] sm:$0xff]
          %s2057 = scalar_lea.vmem [#allocation5], %s2054
          %v2058 = vld [vmem:[%s2057] sm:$0xff]
          %v2060 = vsel %vm1015, %v2030, 0
          %v2063 = vsel %vm1015, %v2031, 0
          %v2066 = vsel %vm1015, %v2032, 0
          %v2069 = vsel %vm1015, %v2033, 0
          %v2072 = vsel %vm1015, %v2034, 0
          %v2075 = vsel %vm1015, %v2035, 0
          %v2078 = vsel %vm1015, %v2036, 0
          %v2081 = vsel %vm1015, %v2037, 0
          %2083 = vmatprep.subr.mxu0 0.0
          %2084 = vmatpush1.msra.mxu0 0.0
          %2085 = vmatprep.subr.mxu0 0.0
          %2086 = vmatpush1.msra.mxu0 0.0
          %2087 = vmatprep.subr.mxu0 0.0
          %2088 = vmatpush1.msra.mxu0 0.0
          %2089 = vmatprep.subr.mxu0 0.0
          %2090 = vmatpush1.msra.mxu0 0.0
          %2091 = vmatprep.subr.mxu0 0.0
          %2092 = vmatpush1.msra.mxu0 0.0
          %2093 = vmatprep.subr.mxu0 0.0
          %2094 = vmatpush1.msra.mxu0 0.0
          %2095 = vmatprep.subr.mxu0 0.0
          %2096 = vmatpush1.msra.mxu0 0.0
          %2097 = vmatprep.subr.mxu0 0.0
          %2098 = vmatpush1.msra.mxu0 0.0
          %2099 = vmatprep.subr.mxu0 0.0
          %2100 = vmatpush1.msra.mxu0 0.0
          %2101 = vmatprep.subr.mxu0 0.0
          %2102 = vmatpush1.msra.mxu0 0.0
          %2103 = vmatprep.subr.mxu0 0.0
          %2104 = vmatpush1.msra.mxu0 0.0
          %2105 = vmatprep.subr.mxu0 0.0
          %2106 = vmatpush1.msra.mxu0 0.0
          %2107 = vmatprep.subr.mxu0 0.0
          %2108 = vmatpush1.msra.mxu0 0.0
          %2109 = vmatprep.subr.mxu0 0.0
          %2110 = vmatpush1.msra.mxu0 0.0
          %2111 = vmatprep.subr.mxu0 0.0
          %2112 = vmatpush1.msra.mxu0 0.0
          %2113 = vmatprep.subr.mxu0 0.0
          %2114 = vmatpush1.msra.mxu0 %v2058
          %2115 = vmatprep.subr.mxu0 0.0
          %2116 = vmatpush2.msra.mxu0 0.0
          %2117 = vmatprep.subr.mxu0 0.0
          %2118 = vmatpush2.msra.mxu0 0.0
          %2119 = vmatprep.subr.mxu0 0.0
          %2120 = vmatpush2.msra.mxu0 0.0
          %2121 = vmatprep.subr.mxu0 0.0
          %2122 = vmatpush2.msra.mxu0 0.0
          %2123 = vmatprep.subr.mxu0 0.0
          %2124 = vmatpush2.msra.mxu0 0.0
          %2125 = vmatprep.subr.mxu0 0.0
          %2126 = vmatpush2.msra.mxu0 0.0
          %2127 = vmatprep.subr.mxu0 0.0
          %2128 = vmatpush2.msra.mxu0 0.0
          %2129 = vmatprep.subr.mxu0 0.0
          %2130 = vmatpush2.msra.mxu0 0.0
          %2131 = vmatprep.subr.mxu0 0.0
          %2132 = vmatpush2.msra.mxu0 0.0
          %2133 = vmatprep.subr.mxu0 0.0
          %2134 = vmatpush2.msra.mxu0 0.0
          %2135 = vmatprep.subr.mxu0 0.0
          %2136 = vmatpush2.msra.mxu0 0.0
          %2137 = vmatprep.subr.mxu0 0.0
          %2138 = vmatpush2.msra.mxu0 0.0
          %2139 = vmatprep.subr.mxu0 0.0
          %2140 = vmatpush2.msra.mxu0 0.0
          %2141 = vmatprep.subr.mxu0 0.0
          %2142 = vmatpush2.msra.mxu0 0.0
          %2143 = vmatprep.subr.mxu0 0.0
          %2144 = vmatpush2.msra.mxu0 0.0
          %2145 = vmatprep.subr.mxu0 0.0
          %2146 = vmatpush2.msra.mxu0 0.0
          %2147 = vmatprep.mubr.f32.mxu0 0.0
          %2148 = vmatmul.mubr.f32.gmra.mxu0 %v2060
          %v2149 = vpop.f32.mrf.mxu0
          %v2150 = vadd.f32 0.0, %v2149
          %v2151 = vpop.f32.mrf.mxu0
          %2152 = vmatprep.mubr.f32.mxu0 0.0
          %2153 = vmatmul.mubr.f32.gmra.mxu0 %v2063
          %v2154 = vpop.f32.mrf.mxu0
          %v2155 = vadd.f32 0.0, %v2154
          %v2156 = vpop.f32.mrf.mxu0
          %2157 = vmatprep.mubr.f32.mxu0 0.0
          %2158 = vmatmul.mubr.f32.gmra.mxu0 %v2066
          %v2159 = vpop.f32.mrf.mxu0
          %v2160 = vadd.f32 0.0, %v2159
          %v2161 = vpop.f32.mrf.mxu0
          %2162 = vmatprep.mubr.f32.mxu0 0.0
          %2163 = vmatmul.mubr.f32.gmra.mxu0 %v2069
          %v2164 = vpop.f32.mrf.mxu0
          %v2165 = vadd.f32 0.0, %v2164
          %v2166 = vpop.f32.mrf.mxu0
          %2167 = vmatprep.mubr.f32.mxu0 0.0
          %2168 = vmatmul.mubr.f32.gmra.mxu0 %v2072
          %v2169 = vpop.f32.mrf.mxu0
          %v2170 = vadd.f32 0.0, %v2169
          %v2171 = vpop.f32.mrf.mxu0
          %2172 = vmatprep.mubr.f32.mxu0 0.0
          %2173 = vmatmul.mubr.f32.gmra.mxu0 %v2075
          %v2174 = vpop.f32.mrf.mxu0
          %v2175 = vadd.f32 0.0, %v2174
          %v2176 = vpop.f32.mrf.mxu0
          %2177 = vmatprep.mubr.f32.mxu0 0.0
          %2178 = vmatmul.mubr.f32.gmra.mxu0 %v2078
          %v2179 = vpop.f32.mrf.mxu0
          %v2180 = vadd.f32 0.0, %v2179
          %v2181 = vpop.f32.mrf.mxu0
          %2182 = vmatprep.mubr.f32.mxu0 0.0
          %2183 = vmatmul.mubr.f32.gmra.mxu0 %v2081
          %v2184 = vpop.f32.mrf.mxu0
          %v2185 = vadd.f32 0.0, %v2184
          %v2186 = vpop.f32.mrf.mxu0
          %2187 = vdwg.mxu0
          %v2188 = vmul.f32 %v1782, %v2056
          %v2189 = vmul.f32 %v1784, %v2056
          %v2190 = vmul.f32 %v1786, %v2056
          %v2191 = vmul.f32 %v1788, %v2056
          %v2192 = vmul.f32 %v1790, %v2056
          %v2193 = vmul.f32 %v1792, %v2056
          %v2194 = vmul.f32 %v1794, %v2056
          %v2195 = vmul.f32 %v1796, %v2056
          %v2196 = vmul.f32 %v2188, %v2150
          %v2197 = vmul.f32 %v2189, %v2155
          %v2198 = vmul.f32 %v2190, %v2160
          %v2199 = vmul.f32 %v2191, %v2165
          %v2200 = vmul.f32 %v2192, %v2170
          %v2201 = vmul.f32 %v2193, %v2175
          %v2202 = vmul.f32 %v2194, %v2180
          %v2203 = vmul.f32 %v2195, %v2185
          %v2204 = vadd.f32 %v2046, %v2196
          %v2205 = vadd.f32 %v2047, %v2197
          %v2206 = vadd.f32 %v2048, %v2198
          %v2207 = vadd.f32 %v2049, %v2199
          %v2208 = vadd.f32 %v2050, %v2200
          %v2209 = vadd.f32 %v2051, %v2201
          %v2210 = vadd.f32 %v2052, %v2202
          %v2211 = vadd.f32 %v2053, %v2203
          %s2212 = scalar_lea.vmem %s458, %s2044 [#allocation9]
          %2213 = vst.msk [vmem:[%s2212] sm:$0xff] %vm627, %v2204
          %2214 = vst.msk [vmem:[%s2212 + $0x8] sm:$0xff] %vm627, %v2205
          %2215 = vst.msk [vmem:[%s2212 + $0x10] sm:$0xff] %vm627, %v2206
          %2216 = vst.msk [vmem:[%s2212 + $0x18] sm:$0xff] %vm627, %v2207
          %2217 = vst.msk [vmem:[%s2212 + $0x20] sm:$0xff] %vm627, %v2208
          %2218 = vst.msk [vmem:[%s2212 + $0x28] sm:$0xff] %vm627, %v2209
          %2219 = vst.msk [vmem:[%s2212 + $0x30] sm:$0xff] %vm627, %v2210
          %2220 = vst.msk [vmem:[%s2212 + $0x38] sm:$0xff] %vm627, %v2211
        $region88: #{hamburger_forward.1} parent=71 // loop_footer
          %s2043 = sadd.s32 1, %s2039
        $region89: #{hamburger_forward.1} parent=71 // loop_footer_branch
          %2038 = sbr.rel target = $region85
        $region90: #{hamburger_forward.1} parent=71 // loop_exit
          _
        %s2221 = sand.u32 %s316, 1
        %s2222 = scalar_lea.sflag [#allocation8], %s2221
        %s2223 = sand.u32 %s316, 1
        %s2224 = smul.addr %s2223, 512
        %s2225 = scalar_lea.vmem [#allocation9], %s2224
        // Predicated region
        $region91: #{hamburger_forward.1} parent=71 // pred_check
          %p2226 = pneg %p326
        $region92: #{hamburger_forward.1} parent=71 // pred_check_branch
          %2228 = sbr.rel (%p2226) target = $region94
        $region93: #{hamburger_forward.1} parent=71 // pred_region
          %s2230 = ssub.s32 8192, 8192
          %2231 = vsyncadd %s2222, %s2230
          %s2232 = smul.addr %s30, 64
          %s2233 = smul.addr %s2232, 128
          %s2234 = scalar_lea.hbm %s13, %s2233
          %s2235 = sshll.u32 %s2225, 4
          %s2236 = int_to_ptr.vmem [resolvable:$true] %s2235
          %2241 = dma.vmem_to_hbm [thread:$0]  %s2236, 8192, %s2234, %s2222, 128, 128, 8
        $region94: #{hamburger_forward.1} parent=71 // pred_fallthru
          _
      $region72: #{hamburger_forward.1} parent=5 // pred_fallthru
        _
      %p2242 = scmp.le.s32.totalorder 2, %s25
      // Predicated region
      $region95: #{hamburger_forward.1} parent=5 // pred_check
        %p2243 = pneg %p2242
      $region96: #{hamburger_forward.1} parent=5 // pred_check_branch
        %2245 = sbr.rel (%p2243) target = $region98
      $region97: #{hamburger_forward.1} parent=5 // pred_region
        %s2246 = ssub.s32 %s25, 2
        // Predicated region
        $region99: #{hamburger_forward.1} parent=97 // pred_check
          %p2247 = pneg %p332
        $region100: #{hamburger_forward.1} parent=97 // pred_check_branch
          %2249 = sbr.rel (%p2247) target = $region102
        $region101: #{hamburger_forward.1} parent=97 // pred_region
          %s2250 = sand.u32 %s317, 1
          %s2251 = scalar_lea.sflag [#allocation8], %s2250
          %s2252 = sand.u32 %s317, 1
          %s2253 = smul.addr %s2252, 512
          %s2254 = scalar_lea.vmem [#allocation9], %s2253
          %2255 = dma.done %s2251, 8192
        $region102: #{hamburger_forward.1} parent=97 // pred_fallthru
          _
      $region98: #{hamburger_forward.1} parent=5 // pred_fallthru
        _
    $region6: #{hamburger_forward.1} parent=1 // loop_footer
      %s29 = sadd.s32 1, %s25
    $region7: #{hamburger_forward.1} parent=1 // loop_footer_branch
      %24 = sbr.rel target = $region3
    $region8: #{hamburger_forward.1} parent=1 // loop_exit
      _
    %2256 = vsyncpa [#allocation7], 1
    %s2257 = scalar_lea.sflag [#allocation7], 1
    %2258 = vsyncpa %s2257, 1
    %2259 = vsyncpa [#allocation8], 1
    %s2260 = scalar_lea.sflag [#allocation8], 1
    %2261 = vsyncpa %s2260, 1

</llo_original>
